<compile_context>
chip_gen: v6e
topology: v6e:2x2x1
jax: 0.10.0
libtpu: 0.0.40
codegen_flags: <defaults>
</compile_context>

<pallas_src>
import functools

import jax
import jax.numpy as jnp
from jax.experimental import pallas as pl
from jax.experimental.pallas import tpu as pltpu

EPS = 1e-5          # BatchNorm2d default eps
NEG_SLOPE = 0.2     # LeakyReLU slope
KH = KW = 3         # kernel_size = 3


# ----------------------------------------------------------------------------- kernels
def _conv_tile(cur_ref, prev_ref, next_ref, w_ref):
    """Conv3x3 (stride 1, pad 1) for one row tile; lane-dense (TILE_H, W*Cout) output.

    cur_ref / prev_ref / next_ref : (TILE_H, W*Cin)  current / neighbor row tiles
    w_ref                         : (KH, W*Cin, W*Cout) block-Toeplitz conv weights
    """
    tile_h = cur_ref.shape[0]
    wco = w_ref.shape[-1]
    t = pl.program_id(1)
    n_t = pl.num_programs(1)

    cur = cur_ref[...]
    # Halo rows from the neighboring tiles (index_map clamps at the image boundary);
    # zero them out when this tile touches the top / bottom of the image (H padding).
    top = prev_ref[tile_h - 1:tile_h, :] * (t > 0).astype(cur.dtype)
    bot = next_ref[0:1, :] * (t < n_t - 1).astype(cur.dtype)
    slab = jnp.concatenate([top, cur, bot], axis=0)        # (TILE_H + 2, W*Cin)

    # 3 MXU matmuls, K = W*Cin, N = W*Cout (lane dense); kw taps + W padding are
    # folded into the Toeplitz weight slabs, so no in-kernel reshapes/relayouts.
    acc = jnp.zeros((tile_h, wco), jnp.float32)
    for kh in range(KH):
        acc = acc + jnp.dot(slab[kh:kh + tile_h, :], w_ref[kh],
                            preferred_element_type=jnp.float32)
    return acc


def _stats_kernel(cur_ref, prev_ref, next_ref, w_ref, stats_ref):
    """Pass 1: per-tile partial sum and sum-of-squares of the (bias-free) conv output."""
    acc = _conv_tile(cur_ref, prev_ref, next_ref, w_ref)    # (TILE_H, W*Cout) f32
    s1 = jnp.sum(acc, axis=0, keepdims=True)                # (1, W*Cout)
    s2 = jnp.sum(acc * acc, axis=0, keepdims=True)          # (1, W*Cout)
    stats_ref[...] = jnp.concatenate([s1, s2], axis=0)      # (2, W*Cout)


def _apply_kernel(cur_ref, prev_ref, next_ref, w_ref, scale_ref, shift_ref, out_ref):
    """Pass 2: recompute conv tile, fused BN scale/shift + LeakyReLU, lane-dense store."""
    acc = _conv_tile(cur_ref, prev_ref, next_ref, w_ref)    # (TILE_H, W*Cout) f32
    y = acc * scale_ref[...] + shift_ref[...]               # folded BatchNorm
    out_ref[...] = jnp.where(y > 0, y, NEG_SLOPE * y).astype(out_ref.dtype)


# ----------------------------------------------------------------------------- wrapper
def _toeplitz_weights(w_oihw, width, conv_dtype):
    """PyTorch conv weight (Cout, Cin, KH, KW) -> T of shape (KH, W*Cin, W*Cout) with
    T[kh, (w+kw-1)*Cin + ci, w*Cout + co] = w[co, ci, kh, kw].
    The missing Toeplitz diagonals at w = 0 / w = W-1 implement the W zero-padding."""
    wt = jnp.transpose(w_oihw, (2, 3, 1, 0)).astype(jnp.float32)   # (KH, KW, Cin, Cout)
    slabs = []
    for kh in range(KH):
        tk = None
        for kw in range(KW):
            sel = jnp.eye(width, width, k=1 - kw, dtype=jnp.float32)  # sel[w+kw-1, w]=1
            blk = jnp.kron(sel, wt[kh, kw])                           # (W*Cin, W*Cout)
            tk = blk if tk is None else tk + blk
        slabs.append(tk)
    return jnp.stack(slabs, axis=0).astype(conv_dtype)


def _pick_tile_h(height, requested):
    """Largest multiple of 8 that is <= requested and divides H; fall back to H."""
    t = (min(requested, height) // 8) * 8
    while t >= 8:
        if height % t == 0:
            return t
        t -= 8
    return height


def d_block_forward(x_nchw, w_oihw, bias, gamma, beta, *, tile_h=32,
                    conv_dtype=jnp.float32):
    """NCHW in / NCHW out; semantics of PyTorch D_block (BN=True, training-mode BN)."""
    # Conv bias is mathematically cancelled by the training-mode BatchNorm mean
    # subtraction -> dropped from the kernel (dead VPU pass + dead DMA otherwise).
    del bias
    N, Cin, H, W = x_nchw.shape
    Cout = w_oihw.shape[0]
    WC, WCo = W * Cin, W * Cout

    th = _pick_tile_h(H, tile_h)
    n_t = H // th

    # NCHW -> (N, H, W*Cin): channels innermost on the lane axis, no padding copy.
    x_rows = jnp.transpose(x_nchw, (0, 2, 3, 1)).reshape(N, H, WC).astype(conv_dtype)
    t_w = _toeplitz_weights(w_oihw, W, conv_dtype)                 # (KH, WC, WCo)

    x_cur_spec = pl.BlockSpec((None, th, WC), lambda n, t: (n, t, 0))
    x_prev_spec = pl.BlockSpec((None, th, WC),
                               lambda n, t: (n, jnp.maximum(t - 1, 0), 0))
    x_next_spec = pl.BlockSpec((None, th, WC),
                               lambda n, t: (n, jnp.minimum(t + 1, n_t - 1), 0))
    w_spec = pl.BlockSpec((KH, WC, WCo), lambda n, t: (0, 0, 0))

    cparams = pltpu.CompilerParams(
        dimension_semantics=("parallel", "parallel"),   # shards across v7x's 2 TCs
        vmem_limit_bytes=32 * 1024 * 1024,              # explicit; safe on v5e/v6e/v7x
    )

    # ---- pass 1: conv tiles -> per-tile partial moments (single sweep) -------------
    partial = pl.pallas_call(
        _stats_kernel,
        grid=(N, n_t),
        in_specs=[x_cur_spec, x_prev_spec, x_next_spec, w_spec],
        out_specs=pl.BlockSpec((None, None, 2, WCo), lambda n, t: (n, t, 0, 0)),
        out_shape=jax.ShapeDtypeStruct((N, n_t, 2, WCo), jnp.float32),
        compiler_params=cparams,
    )(x_rows, x_rows, x_rows, t_w)

    # ---- tiny cross-tile reduction + BN folding (plain JAX) ------------------------
    moments = partial.reshape(N, n_t, 2, W, Cout).sum(axis=(0, 1, 3))   # (2, Cout)
    count = jnp.float32(N * H * W)
    mean = moments[0] / count
    var = moments[1] / count - mean * mean      # biased variance (PyTorch training BN)
    scale = gamma.astype(jnp.float32) * jax.lax.rsqrt(var + EPS)
    shift = beta.astype(jnp.float32) - mean * scale
    scale_l = jnp.tile(scale, W).reshape(1, WCo)   # lane layout: index = w*Cout + co
    shift_l = jnp.tile(shift, W).reshape(1, WCo)

    # ---- pass 2: recompute conv, fused scale/shift + LeakyReLU, lane-dense store ---
    out_rows = pl.pallas_call(
        _apply_kernel,
        grid=(N, n_t),
        in_specs=[x_cur_spec, x_prev_spec, x_next_spec, w_spec,
                  pl.BlockSpec((1, WCo), lambda n, t: (0, 0)),
                  pl.BlockSpec((1, WCo), lambda n, t: (0, 0))],
        out_specs=pl.BlockSpec((None, th, WCo), lambda n, t: (n, t, 0)),
        out_shape=jax.ShapeDtypeStruct((N, H, WCo), jnp.float32),
        compiler_params=cparams,
    )(x_rows, x_rows, x_rows, t_w, scale_l, shift_l)

    # (N, H, W*Cout) -> NCHW
    return jnp.transpose(out_rows.reshape(N, H, W, Cout), (0, 3, 1, 2))


# ----------------------------------------------------------------------------- reference
def d_block_reference(x_nchw, w_oihw, bias, gamma, beta):
    """Pure-JAX reference (same semantics as the PyTorch module, incl. the conv bias)."""
    conv = jax.lax.conv_general_dilated(
        x_nchw.astype(jnp.float32), w_oihw.astype(jnp.float32),
        window_strides=(1, 1), padding=((1, 1), (1, 1)),
        dimension_numbers=("NCHW", "OIHW", "NCHW"),
        precision=jax.lax.Precision.HIGHEST)
    conv = conv + bias.reshape(1, -1, 1, 1)
    mean = jnp.mean(conv, axis=(0, 2, 3), keepdims=True)
    var = jnp.mean((conv - mean) ** 2, axis=(0, 2, 3), keepdims=True)
    y = (conv - mean) * jax.lax.rsqrt(var + EPS)
    y = y * gamma.reshape(1, -1, 1, 1) + beta.reshape(1, -1, 1, 1)
    return jnp.where(y > 0, y, NEG_SLOPE * y)


if __name__ == "__main__":
    key = jax.random.PRNGKey(0)
    k_x, k_w, k_b, k_g, k_be = jax.random.split(key, 5)

    N, ch_in, ch_out, H, W = 2, 4, 8, 16, 16

    x = jax.random.normal(k_x, (N, ch_in, H, W), dtype=jnp.float32)

    # Conv2d-style uniform init; non-trivial BN affine params to exercise scale/shift.
    fan_in = ch_in * KH * KW
    bound = 1.0 / jnp.sqrt(jnp.float32(fan_in))
    w = jax.random.uniform(k_w, (ch_out, ch_in, KH, KW),
                           minval=-bound, maxval=bound, dtype=jnp.float32)
    b = jax.random.uniform(k_b, (ch_out,), minval=-bound, maxval=bound,
                           dtype=jnp.float32)
    gamma = jax.random.uniform(k_g, (ch_out,), minval=0.5, maxval=1.5,
                               dtype=jnp.float32)
    beta = 0.1 * jax.random.normal(k_be, (ch_out,), dtype=jnp.float32)

    # tile_h=8 -> 2 row tiles per image: exercises the halo masking and the (N, nT) grid.
    fwd = jax.jit(functools.partial(d_block_forward, tile_h=8))
    out = jax.block_until_ready(fwd(x, w, b, gamma, beta))

    ref = jax.block_until_ready(d_block_reference(x, w, b, gamma, beta))
    assert out.shape == (N, ch_out, H, W)
    assert jnp.allclose(out, ref, atol=1e-3, rtol=1e-3), "mismatch vs reference"

    print("KERNEL_OK")
</pallas_src>

<mosaic_0001>
module attributes {stable_mosaic.version = 11 : i64} {
  func.func @_stats_kernel(%arg0: i32, %arg1: i32, %arg2: memref<1x8x64xf32, #tpu.memory_space<vmem>>, %arg3: memref<1x8x64xf32, #tpu.memory_space<vmem>>, %arg4: memref<1x8x64xf32, #tpu.memory_space<vmem>>, %arg5: memref<3x64x128xf32, #tpu.memory_space<vmem>>, %arg6: memref<1x1x2x128xf32, #tpu.memory_space<vmem>>) attributes {dimension_semantics = [#tpu.dimension_semantics<parallel>, #tpu.dimension_semantics<parallel>], iteration_bounds = array<i64: 2, 2>, scalar_prefetch = 0 : i64, scratch_operands = 0 : i64, tpu.core_type = #tpu.core_type<tc>, window_params = [{transform_indices = @transform_0, window_bounds = array<i64: 1, 8, 64>}, {transform_indices = @transform_1, window_bounds = array<i64: 1, 8, 64>}, {transform_indices = @transform_2, window_bounds = array<i64: 1, 8, 64>}, {pipeline_mode = #tpu.pipeline_mode<synchronous>, transform_indices = @transform_3, window_bounds = array<i64: 3, 64, 128>}, {transform_indices = @transform_4, window_bounds = array<i64: 1, 1, 2, 128>}]} {
    %c0 = arith.constant 0 : index
    %c0_0 = arith.constant 0 : index
    %c0_1 = arith.constant 0 : index
    %0 = vector.load %arg2[%c0, %c0_0, %c0_1] : memref<1x8x64xf32, #tpu.memory_space<vmem>>, vector<1x8x64xf32>
    %1 = vector.shape_cast %0 : vector<1x8x64xf32> to vector<8x64xf32>
    %c0_2 = arith.constant 0 : index
    %c7 = arith.constant 7 : index
    %c0_3 = arith.constant 0 : index
    %2 = vector.load %arg3[%c0_2, %c7, %c0_3] : memref<1x8x64xf32, #tpu.memory_space<vmem>>, vector<1x1x64xf32>
    %3 = vector.shape_cast %2 : vector<1x1x64xf32> to vector<1x64xf32>
    %c0_i32 = arith.constant 0 : i32
    %4 = arith.cmpi sgt, %arg1, %c0_i32 : i32
    %5 = arith.extui %4 : i1 to i32
    %6 = arith.sitofp %5 : i32 to f32
    %7 = vector.broadcast %6 : f32 to vector<1x64xf32>
    %8 = arith.mulf %3, %7 : vector<1x64xf32>
    %c0_4 = arith.constant 0 : index
    %c0_5 = arith.constant 0 : index
    %c0_6 = arith.constant 0 : index
    %9 = vector.load %arg4[%c0_4, %c0_5, %c0_6] : memref<1x8x64xf32, #tpu.memory_space<vmem>>, vector<1x1x64xf32>
    %10 = vector.shape_cast %9 : vector<1x1x64xf32> to vector<1x64xf32>
    %c1_i32 = arith.constant 1 : i32
    %11 = arith.cmpi slt, %arg1, %c1_i32 : i32
    %12 = arith.extui %11 : i1 to i32
    %13 = arith.sitofp %12 : i32 to f32
    %14 = vector.broadcast %13 : f32 to vector<1x64xf32>
    %15 = arith.mulf %10, %14 : vector<1x64xf32>
    %16 = tpu.concatenate %8, %1, %15 in 0 : vector<1x64xf32>, vector<8x64xf32>, vector<1x64xf32> -> vector<10x64xf32>
    %cst = arith.constant 0.000000e+00 : f32
    %17 = vector.broadcast %cst : f32 to vector<8x128xf32>
    %18 = vector.extract_strided_slice %16 {offsets = [0, 0], sizes = [8, 64], strides = [1, 1]} : vector<10x64xf32> to vector<8x64xf32>
    %c0_7 = arith.constant 0 : index
    %c0_8 = arith.constant 0 : index
    %c0_9 = arith.constant 0 : index
    %19 = vector.load %arg5[%c0_7, %c0_8, %c0_9] : memref<3x64x128xf32, #tpu.memory_space<vmem>>, vector<1x64x128xf32>
    %20 = vector.shape_cast %19 : vector<1x64x128xf32> to vector<64x128xf32>
    %cst_10 = arith.constant dense<0.000000e+00> : vector<8x128xf32>
    %21 = tpu.matmul %18, %20, %cst_10 {dimension_numbers = #tpu.dot_dimension_numbers<[1], [0], [0], [1], [0, 0, 1, 1], [], []>} : vector<8x64xf32>, vector<64x128xf32>, vector<8x128xf32> -> vector<8x128xf32>
    %22 = arith.addf %17, %21 : vector<8x128xf32>
    %23 = vector.extract_strided_slice %16 {offsets = [1, 0], sizes = [8, 64], strides = [1, 1]} : vector<10x64xf32> to vector<8x64xf32>
    %c1 = arith.constant 1 : index
    %c0_11 = arith.constant 0 : index
    %c0_12 = arith.constant 0 : index
    %24 = vector.load %arg5[%c1, %c0_11, %c0_12] : memref<3x64x128xf32, #tpu.memory_space<vmem>>, vector<1x64x128xf32>
    %25 = vector.shape_cast %24 : vector<1x64x128xf32> to vector<64x128xf32>
    %cst_13 = arith.constant dense<0.000000e+00> : vector<8x128xf32>
    %26 = tpu.matmul %23, %25, %cst_13 {dimension_numbers = #tpu.dot_dimension_numbers<[1], [0], [0], [1], [0, 0, 1, 1], [], []>} : vector<8x64xf32>, vector<64x128xf32>, vector<8x128xf32> -> vector<8x128xf32>
    %27 = arith.addf %22, %26 : vector<8x128xf32>
    %28 = vector.extract_strided_slice %16 {offsets = [2, 0], sizes = [8, 64], strides = [1, 1]} : vector<10x64xf32> to vector<8x64xf32>
    %c2 = arith.constant 2 : index
    %c0_14 = arith.constant 0 : index
    %c0_15 = arith.constant 0 : index
    %29 = vector.load %arg5[%c2, %c0_14, %c0_15] : memref<3x64x128xf32, #tpu.memory_space<vmem>>, vector<1x64x128xf32>
    %30 = vector.shape_cast %29 : vector<1x64x128xf32> to vector<64x128xf32>
    %cst_16 = arith.constant dense<0.000000e+00> : vector<8x128xf32>
    %31 = tpu.matmul %28, %30, %cst_16 {dimension_numbers = #tpu.dot_dimension_numbers<[1], [0], [0], [1], [0, 0, 1, 1], [], []>} : vector<8x64xf32>, vector<64x128xf32>, vector<8x128xf32> -> vector<8x128xf32>
    %32 = arith.addf %27, %31 : vector<8x128xf32>
    %cst_17 = arith.constant dense<0.000000e+00> : vector<128xf32>
    %33 = vector.multi_reduction <add>, %32, %cst_17 [0] : vector<8x128xf32> to vector<128xf32>
    %34 = vector.shape_cast %33 : vector<128xf32> to vector<1x128xf32>
    %35 = arith.mulf %32, %32 : vector<8x128xf32>
    %cst_18 = arith.constant dense<0.000000e+00> : vector<128xf32>
    %36 = vector.multi_reduction <add>, %35, %cst_18 [0] : vector<8x128xf32> to vector<128xf32>
    %37 = vector.shape_cast %36 : vector<128xf32> to vector<1x128xf32>
    %38 = tpu.concatenate %34, %37 in 0 : vector<1x128xf32>, vector<1x128xf32> -> vector<2x128xf32>
    %c0_19 = arith.constant 0 : index
    %c0_20 = arith.constant 0 : index
    %c0_21 = arith.constant 0 : index
    %c0_22 = arith.constant 0 : index
    %39 = vector.load %arg6[%c0_19, %c0_20, %c0_21, %c0_22] : memref<1x1x2x128xf32, #tpu.memory_space<vmem>>, vector<1x1x2x128xf32>
    %40 = vector.shape_cast %39 : vector<1x1x2x128xf32> to vector<2x128xf32>
    %41 = vector.shape_cast %38 : vector<2x128xf32> to vector<1x1x2x128xf32>
    tpu.vector_store %arg6[%c0_19, %c0_20, %c0_21, %c0_22], %41 {strides = array<i32>} : memref<1x1x2x128xf32, #tpu.memory_space<vmem>>, vector<1x1x2x128xf32>,
    return
  }
  func.func @transform_0(%arg0: i32, %arg1: i32) -> (i32, i32, i32) {
    %c0_i32 = arith.constant 0 : i32
    %c0_i32_0 = arith.constant 0 : i32
    return %arg0, %arg1, %c0_i32 : i32, i32, i32
  }
  func.func @transform_1(%arg0: i32, %arg1: i32) -> (i32, i32, i32) {
    %c1_i32 = arith.constant 1 : i32
    %0 = arith.subi %arg1, %c1_i32 : i32
    %c0_i32 = arith.constant 0 : i32
    %1 = arith.maxsi %0, %c0_i32 : i32
    %c0_i32_0 = arith.constant 0 : i32
    %c0_i32_1 = arith.constant 0 : i32
    return %arg0, %1, %c0_i32_0 : i32, i32, i32
  }
  func.func @transform_2(%arg0: i32, %arg1: i32) -> (i32, i32, i32) {
    %c1_i32 = arith.constant 1 : i32
    %0 = arith.addi %arg1, %c1_i32 : i32
    %c1_i32_0 = arith.constant 1 : i32
    %1 = arith.minsi %0, %c1_i32_0 : i32
    %c0_i32 = arith.constant 0 : i32
    %c0_i32_1 = arith.constant 0 : i32
    return %arg0, %1, %c0_i32 : i32, i32, i32
  }
  func.func @transform_3(%arg0: i32, %arg1: i32) -> (i32, i32, i32) {
    %c0_i32 = arith.constant 0 : i32
    %c0_i32_0 = arith.constant 0 : i32
    %c0_i32_1 = arith.constant 0 : i32
    %c0_i32_2 = arith.constant 0 : i32
    return %c0_i32, %c0_i32_0, %c0_i32_1 : i32, i32, i32
  }
  func.func @transform_4(%arg0: i32, %arg1: i32) -> (i32, i32, i32, i32) {
    %c0_i32 = arith.constant 0 : i32
    %c0_i32_0 = arith.constant 0 : i32
    %c0_i32_1 = arith.constant 0 : i32
    return %arg0, %arg1, %c0_i32, %c0_i32_0 : i32, i32, i32, i32
  }
}

module attributes {stable_mosaic.version = 11 : i64} {
  func.func @_apply_kernel(%arg0: i32, %arg1: i32, %arg2: memref<1x8x64xf32, #tpu.memory_space<vmem>>, %arg3: memref<1x8x64xf32, #tpu.memory_space<vmem>>, %arg4: memref<1x8x64xf32, #tpu.memory_space<vmem>>, %arg5: memref<3x64x128xf32, #tpu.memory_space<vmem>>, %arg6: memref<1x128xf32, #tpu.memory_space<vmem>>, %arg7: memref<1x128xf32, #tpu.memory_space<vmem>>, %arg8: memref<1x8x128xf32, #tpu.memory_space<vmem>>) attributes {dimension_semantics = [#tpu.dimension_semantics<parallel>, #tpu.dimension_semantics<parallel>], iteration_bounds = array<i64: 2, 2>, scalar_prefetch = 0 : i64, scratch_operands = 0 : i64, tpu.core_type = #tpu.core_type<tc>, window_params = [{transform_indices = @transform_0, window_bounds = array<i64: 1, 8, 64>}, {transform_indices = @transform_1, window_bounds = array<i64: 1, 8, 64>}, {transform_indices = @transform_2, window_bounds = array<i64: 1, 8, 64>}, {pipeline_mode = #tpu.pipeline_mode<synchronous>, transform_indices = @transform_3, window_bounds = array<i64: 3, 64, 128>}, {pipeline_mode = #tpu.pipeline_mode<synchronous>, transform_indices = @transform_4, window_bounds = array<i64: 1, 128>}, {pipeline_mode = #tpu.pipeline_mode<synchronous>, transform_indices = @transform_5, window_bounds = array<i64: 1, 128>}, {transform_indices = @transform_6, window_bounds = array<i64: 1, 8, 128>}]} {
    %c0 = arith.constant 0 : index
    %c0_0 = arith.constant 0 : index
    %c0_1 = arith.constant 0 : index
    %0 = vector.load %arg2[%c0, %c0_0, %c0_1] : memref<1x8x64xf32, #tpu.memory_space<vmem>>, vector<1x8x64xf32>
    %1 = vector.shape_cast %0 : vector<1x8x64xf32> to vector<8x64xf32>
    %c0_2 = arith.constant 0 : index
    %c7 = arith.constant 7 : index
    %c0_3 = arith.constant 0 : index
    %2 = vector.load %arg3[%c0_2, %c7, %c0_3] : memref<1x8x64xf32, #tpu.memory_space<vmem>>, vector<1x1x64xf32>
    %3 = vector.shape_cast %2 : vector<1x1x64xf32> to vector<1x64xf32>
    %c0_i32 = arith.constant 0 : i32
    %4 = arith.cmpi sgt, %arg1, %c0_i32 : i32
    %5 = arith.extui %4 : i1 to i32
    %6 = arith.sitofp %5 : i32 to f32
    %7 = vector.broadcast %6 : f32 to vector<1x64xf32>
    %8 = arith.mulf %3, %7 : vector<1x64xf32>
    %c0_4 = arith.constant 0 : index
    %c0_5 = arith.constant 0 : index
    %c0_6 = arith.constant 0 : index
    %9 = vector.load %arg4[%c0_4, %c0_5, %c0_6] : memref<1x8x64xf32, #tpu.memory_space<vmem>>, vector<1x1x64xf32>
    %10 = vector.shape_cast %9 : vector<1x1x64xf32> to vector<1x64xf32>
    %c1_i32 = arith.constant 1 : i32
    %11 = arith.cmpi slt, %arg1, %c1_i32 : i32
    %12 = arith.extui %11 : i1 to i32
    %13 = arith.sitofp %12 : i32 to f32
    %14 = vector.broadcast %13 : f32 to vector<1x64xf32>
    %15 = arith.mulf %10, %14 : vector<1x64xf32>
    %16 = tpu.concatenate %8, %1, %15 in 0 : vector<1x64xf32>, vector<8x64xf32>, vector<1x64xf32> -> vector<10x64xf32>
    %cst = arith.constant 0.000000e+00 : f32
    %17 = vector.broadcast %cst : f32 to vector<8x128xf32>
    %18 = vector.extract_strided_slice %16 {offsets = [0, 0], sizes = [8, 64], strides = [1, 1]} : vector<10x64xf32> to vector<8x64xf32>
    %c0_7 = arith.constant 0 : index
    %c0_8 = arith.constant 0 : index
    %c0_9 = arith.constant 0 : index
    %19 = vector.load %arg5[%c0_7, %c0_8, %c0_9] : memref<3x64x128xf32, #tpu.memory_space<vmem>>, vector<1x64x128xf32>
    %20 = vector.shape_cast %19 : vector<1x64x128xf32> to vector<64x128xf32>
    %cst_10 = arith.constant dense<0.000000e+00> : vector<8x128xf32>
    %21 = tpu.matmul %18, %20, %cst_10 {dimension_numbers = #tpu.dot_dimension_numbers<[1], [0], [0], [1], [0, 0, 1, 1], [], []>} : vector<8x64xf32>, vector<64x128xf32>, vector<8x128xf32> -> vector<8x128xf32>
    %22 = arith.addf %17, %21 : vector<8x128xf32>
    %23 = vector.extract_strided_slice %16 {offsets = [1, 0], sizes = [8, 64], strides = [1, 1]} : vector<10x64xf32> to vector<8x64xf32>
    %c1 = arith.constant 1 : index
    %c0_11 = arith.constant 0 : index
    %c0_12 = arith.constant 0 : index
    %24 = vector.load %arg5[%c1, %c0_11, %c0_12] : memref<3x64x128xf32, #tpu.memory_space<vmem>>, vector<1x64x128xf32>
    %25 = vector.shape_cast %24 : vector<1x64x128xf32> to vector<64x128xf32>
    %cst_13 = arith.constant dense<0.000000e+00> : vector<8x128xf32>
    %26 = tpu.matmul %23, %25, %cst_13 {dimension_numbers = #tpu.dot_dimension_numbers<[1], [0], [0], [1], [0, 0, 1, 1], [], []>} : vector<8x64xf32>, vector<64x128xf32>, vector<8x128xf32> -> vector<8x128xf32>
    %27 = arith.addf %22, %26 : vector<8x128xf32>
    %28 = vector.extract_strided_slice %16 {offsets = [2, 0], sizes = [8, 64], strides = [1, 1]} : vector<10x64xf32> to vector<8x64xf32>
    %c2 = arith.constant 2 : index
    %c0_14 = arith.constant 0 : index
    %c0_15 = arith.constant 0 : index
    %29 = vector.load %arg5[%c2, %c0_14, %c0_15] : memref<3x64x128xf32, #tpu.memory_space<vmem>>, vector<1x64x128xf32>
    %30 = vector.shape_cast %29 : vector<1x64x128xf32> to vector<64x128xf32>
    %cst_16 = arith.constant dense<0.000000e+00> : vector<8x128xf32>
    %31 = tpu.matmul %28, %30, %cst_16 {dimension_numbers = #tpu.dot_dimension_numbers<[1], [0], [0], [1], [0, 0, 1, 1], [], []>} : vector<8x64xf32>, vector<64x128xf32>, vector<8x128xf32> -> vector<8x128xf32>
    %32 = arith.addf %27, %31 : vector<8x128xf32>
    %c0_17 = arith.constant 0 : index
    %c0_18 = arith.constant 0 : index
    %33 = vector.load %arg6[%c0_17, %c0_18] : memref<1x128xf32, #tpu.memory_space<vmem>>, vector<1x128xf32>
    %34 = vector.broadcast %33 : vector<1x128xf32> to vector<8x128xf32>
    %35 = arith.mulf %32, %34 : vector<8x128xf32>
    %c0_19 = arith.constant 0 : index
    %c0_20 = arith.constant 0 : index
    %36 = vector.load %arg7[%c0_19, %c0_20] : memref<1x128xf32, #tpu.memory_space<vmem>>, vector<1x128xf32>
    %37 = vector.broadcast %36 : vector<1x128xf32> to vector<8x128xf32>
    %38 = arith.addf %35, %37 : vector<8x128xf32>
    %cst_21 = arith.constant 0.000000e+00 : f32
    %39 = vector.broadcast %cst_21 : f32 to vector<8x128xf32>
    %40 = arith.cmpf ogt, %38, %39 : vector<8x128xf32>
    %cst_22 = arith.constant 2.000000e-01 : f32
    %41 = vector.broadcast %cst_22 : f32 to vector<8x128xf32>
    %42 = arith.mulf %41, %38 : vector<8x128xf32>
    %43 = arith.select %40, %38, %42 : vector<8x128xi1>, vector<8x128xf32>
    %c0_23 = arith.constant 0 : index
    %c0_24 = arith.constant 0 : index
    %c0_25 = arith.constant 0 : index
    %44 = vector.load %arg8[%c0_23, %c0_24, %c0_25] : memref<1x8x128xf32, #tpu.memory_space<vmem>>, vector<1x8x128xf32>
    %45 = vector.shape_cast %44 : vector<1x8x128xf32> to vector<8x128xf32>
    %46 = vector.shape_cast %43 : vector<8x128xf32> to vector<1x8x128xf32>
    tpu.vector_store %arg8[%c0_23, %c0_24, %c0_25], %46 {strides = array<i32>} : memref<1x8x128xf32, #tpu.memory_space<vmem>>, vector<1x8x128xf32>,
    return
  }
  func.func @transform_0(%arg0: i32, %arg1: i32) -> (i32, i32, i32) {
    %c0_i32 = arith.constant 0 : i32
    %c0_i32_0 = arith.constant 0 : i32
    return %arg0, %arg1, %c0_i32 : i32, i32, i32
  }
  func.func @transform_1(%arg0: i32, %arg1: i32) -> (i32, i32, i32) {
    %c1_i32 = arith.constant 1 : i32
    %0 = arith.subi %arg1, %c1_i32 : i32
    %c0_i32 = arith.constant 0 : i32
    %1 = arith.maxsi %0, %c0_i32 : i32
    %c0_i32_0 = arith.constant 0 : i32
    %c0_i32_1 = arith.constant 0 : i32
    return %arg0, %1, %c0_i32_0 : i32, i32, i32
  }
  func.func @transform_2(%arg0: i32, %arg1: i32) -> (i32, i32, i32) {
    %c1_i32 = arith.constant 1 : i32
    %0 = arith.addi %arg1, %c1_i32 : i32
    %c1_i32_0 = arith.constant 1 : i32
    %1 = arith.minsi %0, %c1_i32_0 : i32
    %c0_i32 = arith.constant 0 : i32
    %c0_i32_1 = arith.constant 0 : i32
    return %arg0, %1, %c0_i32 : i32, i32, i32
  }
  func.func @transform_3(%arg0: i32, %arg1: i32) -> (i32, i32, i32) {
    %c0_i32 = arith.constant 0 : i32
    %c0_i32_0 = arith.constant 0 : i32
    %c0_i32_1 = arith.constant 0 : i32
    %c0_i32_2 = arith.constant 0 : i32
    return %c0_i32, %c0_i32_0, %c0_i32_1 : i32, i32, i32
  }
  func.func @transform_4(%arg0: i32, %arg1: i32) -> (i32, i32) {
    %c0_i32 = arith.constant 0 : i32
    %c0_i32_0 = arith.constant 0 : i32
    %c0_i32_1 = arith.constant 0 : i32
    return %c0_i32, %c0_i32_0 : i32, i32
  }
  func.func @transform_5(%arg0: i32, %arg1: i32) -> (i32, i32) {
    %c0_i32 = arith.constant 0 : i32
    %c0_i32_0 = arith.constant 0 : i32
    %c0_i32_1 = arith.constant 0 : i32
    return %c0_i32, %c0_i32_0 : i32, i32
  }
  func.func @transform_6(%arg0: i32, %arg1: i32) -> (i32, i32, i32) {
    %c0_i32 = arith.constant 0 : i32
    %c0_i32_0 = arith.constant 0 : i32
    return %arg0, %arg1, %c0_i32 : i32, i32, i32
  }
}

</mosaic_0001>

<llo_original>
// kernel: tile.13
$region0: #{tile.13}
  #allocation0 [shape = 's32[1]{0}', space=sflag, size = 0x4, scoped, tag = 'scoped memory for tile.13']
  %s0 = inlined_call_operand.vmem [shape: f32[8], index: 0, kind: input, shape index: {}]
  %s1 = inlined_call_operand.vmem [shape: f32[16,8], index: 1, kind: output, shape index: {}]
  // Predicated region
  $region2: #{tile.13} parent=0 // pred_check
    _
  $region3: #{tile.13} parent=0 // pred_check_branch
    %3 = sbr.rel (0) target = $region5
  $region4: #{tile.13} parent=0 // pred_region
    _
  $region5: #{tile.13} parent=0 // pred_fallthru
    _
  %v4 = vld [vmem:[%s0] ss:$0 sm:$0xff]
  %5 = vst [vmem:[%s1] sm:$0xff] %v4
  %s6 = scalar_lea.vmem %s1, 8
  %7 = vst [vmem:[%s6] sm:$0xff] %v4

// kernel: tile.14
$region0: #{tile.14}
  %s0 = inlined_call_operand.vmem [shape: f32[16,8], index: 0, kind: input, shape index: {}]
  %s1 = inlined_call_operand.vmem [shape: f32[1,128], index: 1, kind: output, shape index: {}]
  $region1: #{tile.14} parent=0
    #allocation0 [shape = 'u8[4096]{0}', space=vmem, size = 0x1000, scoped, tag = 'scoped mem for output reshape']
    %v2 = vld [vmem:[%s0] sm:$0x1]
    %vm3 = vcmask 64512
    %4 = vst.msk [vmem:[#allocation0] sm:$0x1] %vm3, %v2
    %s5 = scalar_lea.vmem %s0, 15
    %v6 = vld [vmem:[%s5] sm:$0x1]
    %7 = vrot.lane.b32.xlu0 %v6, 120
    %v8 = vpop.permute.xlu0 %7
    %vm9 = vcmask 1048512
    %10 = vst.msk [vmem:[#allocation0] sm:$0x1] %vm9, %v8
    %s11 = scalar_lea.vmem %s0, 14
    %v12 = vld [vmem:[%s11] sm:$0x1]
    %13 = vrot.lane.b32.xlu0 %v12, 112
    %v14 = vpop.permute.xlu0 %13
    %vm15 = vcmask 982912
    %16 = vst.msk [vmem:[#allocation0] sm:$0x1] %vm15, %v14
    %s17 = scalar_lea.vmem %s0, 13
    %v18 = vld [vmem:[%s17] sm:$0x1]
    %19 = vrot.lane.b32.xlu0 %v18, 104
    %v20 = vpop.permute.xlu0 %19
    %vm21 = vcmask 917312
    %22 = vst.msk [vmem:[#allocation0] sm:$0x1] %vm21, %v20
    %s23 = scalar_lea.vmem %s0, 12
    %v24 = vld [vmem:[%s23] sm:$0x1]
    %25 = vrot.lane.b32.xlu0 %v24, 96
    %v26 = vpop.permute.xlu0 %25
    %vm27 = vcmask 851712
    %28 = vst.msk [vmem:[#allocation0] sm:$0x1] %vm27, %v26
    %s29 = scalar_lea.vmem %s0, 11
    %v30 = vld [vmem:[%s29] sm:$0x1]
    %31 = vrot.lane.b32.xlu0 %v30, 88
    %v32 = vpop.permute.xlu0 %31
    %vm33 = vcmask 786112
    %34 = vst.msk [vmem:[#allocation0] sm:$0x1] %vm33, %v32
    %s35 = scalar_lea.vmem %s0, 10
    %v36 = vld [vmem:[%s35] sm:$0x1]
    %37 = vrot.lane.b32.xlu0 %v36, 80
    %v38 = vpop.permute.xlu0 %37
    %vm39 = vcmask 720512
    %40 = vst.msk [vmem:[#allocation0] sm:$0x1] %vm39, %v38
    %s41 = scalar_lea.vmem %s0, 9
    %v42 = vld [vmem:[%s41] sm:$0x1]
    %43 = vrot.lane.b32.xlu0 %v42, 72
    %v44 = vpop.permute.xlu0 %43
    %vm45 = vcmask 654912
    %46 = vst.msk [vmem:[#allocation0] sm:$0x1] %vm45, %v44
    %s47 = scalar_lea.vmem %s0, 8
    %v48 = vld [vmem:[%s47] sm:$0x1]
    %49 = vrot.lane.b32.xlu0 %v48, 64
    %v50 = vpop.permute.xlu0 %49
    %vm51 = vcmask 589312
    %52 = vst.msk [vmem:[#allocation0] sm:$0x1] %vm51, %v50
    %s53 = scalar_lea.vmem %s0, 7
    %v54 = vld [vmem:[%s53] sm:$0x1]
    %55 = vrot.lane.b32.xlu0 %v54, 56
    %v56 = vpop.permute.xlu0 %55
    %vm57 = vcmask 523712
    %58 = vst.msk [vmem:[#allocation0] sm:$0x1] %vm57, %v56
    %s59 = scalar_lea.vmem %s0, 6
    %v60 = vld [vmem:[%s59] sm:$0x1]
    %61 = vrot.lane.b32.xlu0 %v60, 48
    %v62 = vpop.permute.xlu0 %61
    %vm63 = vcmask 458112
    %64 = vst.msk [vmem:[#allocation0] sm:$0x1] %vm63, %v62
    %s65 = scalar_lea.vmem %s0, 5
    %v66 = vld [vmem:[%s65] sm:$0x1]
    %67 = vrot.lane.b32.xlu0 %v66, 40
    %v68 = vpop.permute.xlu0 %67
    %vm69 = vcmask 392512
    %70 = vst.msk [vmem:[#allocation0] sm:$0x1] %vm69, %v68
    %s71 = scalar_lea.vmem %s0, 4
    %v72 = vld [vmem:[%s71] sm:$0x1]
    %73 = vrot.lane.b32.xlu0 %v72, 32
    %v74 = vpop.permute.xlu0 %73
    %vm75 = vcmask 326912
    %76 = vst.msk [vmem:[#allocation0] sm:$0x1] %vm75, %v74
    %s77 = scalar_lea.vmem %s0, 3
    %v78 = vld [vmem:[%s77] sm:$0x1]
    %79 = vrot.lane.b32.xlu0 %v78, 24
    %v80 = vpop.permute.xlu0 %79
    %vm81 = vcmask 261312
    %82 = vst.msk [vmem:[#allocation0] sm:$0x1] %vm81, %v80
    %s83 = scalar_lea.vmem %s0, 2
    %v84 = vld [vmem:[%s83] sm:$0x1]
    %85 = vrot.lane.b32.xlu0 %v84, 16
    %v86 = vpop.permute.xlu0 %85
    %vm87 = vcmask 195712
    %88 = vst.msk [vmem:[#allocation0] sm:$0x1] %vm87, %v86
    %s89 = scalar_lea.vmem %s0, 1
    %v90 = vld [vmem:[%s89] sm:$0x1]
    %91 = vrot.lane.b32.xlu0 %v90, 8
    %v92 = vpop.permute.xlu0 %91
    %vm93 = vcmask 130112
    %94 = vst.msk [vmem:[#allocation0] sm:$0x1] %vm93, %v92
    %s96 = sshll.u32 1, 1
    %s97 = ssub.s32 %s96, 1
    %v99 = vld [vmem:[#allocation0] sm:%s97]
    %s100 = sshll.u32 1, 1
    %s101 = ssub.s32 %s100, 1
    %102 = vst [vmem:[%s1] sm:%s101] %v99

// kernel: d_block_forward.2
$region0: #{d_block_forward.2}
  #allocation0 [shape = 'u32[]', space=smem, size = 0x4, offset = 0x4, fixed_abs, tag = 'smem constant byte address 0x4 - core index']
  #allocation1 [shape = 'u32[144,128]{1,0:T(1,128)}', space=vmem, size = 0x12000, scoped, tag = 'internal scratch']
  %s0 = inlined_call_operand.vmem [shape: f32[2,16,64], index: 0, kind: input, shape index: {}, may-alias: {0,1,2}]
  %s1 = inlined_call_operand.vmem [shape: f32[2,16,64], index: 1, kind: input, shape index: {}, may-alias: {0,1,2}]
  %s2 = inlined_call_operand.vmem [shape: f32[2,16,64], index: 2, kind: input, shape index: {}, may-alias: {0,1,2}]
  %s3 = inlined_call_operand.vmem [shape: f32[3,64,128], index: 3, kind: input, shape index: {}]
  %s4 = inlined_call_operand.vmem [shape: f32[2,2,2,128], index: 4, kind: output, shape index: {}]
  %s5 = sld [smem:[#allocation0]]
  $region49: #{d_block_forward.2} parent=0
    _
  %s7 = ssub.s32 1, %s5
  %s8 = scalar_select 0, %s7, %s5
  loop: start=0, step=1, limit=6
  $region2: #{d_block_forward.2} parent=0 // loop_pre_header
    _
  $region3: #{d_block_forward.2} parent=0 // loop_header
    %s10 = sphi 0, %s14
    %p11 = scmp.ge.s32.totalorder %s10, 6
    %s17 = sphi 0, %s29
    %s18 = sphi 0, %s25
    %s19 = sphi 0, %s17
    %s20 = sphi 0, %s18
    %s21 = sphi 0, %s19
    %s22 = sphi 0, %s20
    %s34 = sphi 0, %s36
    %s37 = sphi 0, %s34
    %s38 = sphi 0, %s37
    %s54 = sphi 0, %s38
    %s68 = sphi 0, %s70
    %s71 = sphi 0, %s68
    %s72 = sphi 0, %s71
    %s88 = sphi 0, %s72
    %s102 = sphi 0, %s104
    %s105 = sphi 0, %s102
    %s106 = sphi 0, %s105
    %s122 = sphi 0, %s106
    %s126 = sphi 0, %s126
    %s128 = sphi 0, %s126
    %s129 = sphi 0, %s128
    %s143 = sphi 0, %s129
    %s151 = sphi 0, %s153
    %s154 = sphi 0, %s151
    %s155 = sphi 0, %s154
    %s171 = sphi 0, %s155
  $region4: #{d_block_forward.2} parent=0 // loop_header_branch
    %13 = sbr.rel (%p11) target = $region8
  $region5: #{d_block_forward.2} parent=0 // loop_body
    %s15 = ssub.s32 %s10, 1
    %s16 = ssub.s32 %s10, 2
    %s23 = sadd.s32 1, %s18
    %p24 = scmp.ge.s32.totalorder %s23, 2
    %s25 = scalar_select %p24, 0, %s23
    %s26 = sadd.s32 1, %s17
    %s27 = scalar_select %p24, %s26, %s17
    %p28 = scmp.ge.s32.totalorder %s27, 2
    %s29 = scalar_select %p28, 0, %s27
    %s30 = ssub.s32 %s17, %s29
    %s31 = ssub.s32 %s18, %s25
    %s32 = sor.u32 %s30, %s31
    %p33 = scmp.eq.s32.totalorder %s32, 0
    %s35 = sadd.s32 %s34, 1
    %s36 = scalar_select %p33, %s34, %s35
    %p39 = pneg %p33
    %p40 = scmp.eq.s32.totalorder %s10, 3
    %p41 = por %p39, %p40
    %p42 = scmp.ne.s32.totalorder %s34, %s37
    %p43 = scmp.eq.s32.totalorder %s10, 0
    %p44 = por %p42, %p43
    %p45 = scmp.ne.s32.totalorder %s34, %s37
    %p46 = scmp.eq.s32.totalorder %s15, 3
    %p47 = por %p45, %p46
    %p48 = scmp.ne.s32.totalorder %s37, %s38
    %p49 = scmp.eq.s32.totalorder %s15, 0
    %p50 = por %p48, %p49
    %p51 = scmp.ne.s32.totalorder %s37, %s38
    %p52 = scmp.eq.s32.totalorder %s16, 3
    %p53 = por %p51, %p52
    %p55 = scmp.ne.s32.totalorder %s38, %s54
    %p56 = scmp.eq.s32.totalorder %s16, 0
    %p57 = por %p55, %p56
    %s58 = ssub.s32 %s18, 1
    %p59 = scmp.gt.s32.totalorder %s58, 0
    %s60 = scalar_select %p59, %s58, 0
    %s61 = ssub.s32 %s25, 1
    %p62 = scmp.gt.s32.totalorder %s61, 0
    %s63 = scalar_select %p62, %s61, 0
    %s64 = ssub.s32 %s17, %s29
    %s65 = ssub.s32 %s60, %s63
    %s66 = sor.u32 %s64, %s65
    %p67 = scmp.eq.s32.totalorder %s66, 0
    %s69 = sadd.s32 %s68, 1
    %s70 = scalar_select %p67, %s68, %s69
    %p73 = pneg %p67
    %p74 = scmp.eq.s32.totalorder %s10, 3
    %p75 = por %p73, %p74
    %p76 = scmp.ne.s32.totalorder %s68, %s71
    %p77 = scmp.eq.s32.totalorder %s10, 0
    %p78 = por %p76, %p77
    %p79 = scmp.ne.s32.totalorder %s68, %s71
    %p80 = scmp.eq.s32.totalorder %s15, 3
    %p81 = por %p79, %p80
    %p82 = scmp.ne.s32.totalorder %s71, %s72
    %p83 = scmp.eq.s32.totalorder %s15, 0
    %p84 = por %p82, %p83
    %p85 = scmp.ne.s32.totalorder %s71, %s72
    %p86 = scmp.eq.s32.totalorder %s16, 3
    %p87 = por %p85, %p86
    %p89 = scmp.ne.s32.totalorder %s72, %s88
    %p90 = scmp.eq.s32.totalorder %s16, 0
    %p91 = por %p89, %p90
    %s92 = sadd.s32 %s18, 1
    %p93 = scmp.lt.s32.totalorder %s92, 1
    %s94 = scalar_select %p93, %s92, 1
    %s95 = sadd.s32 %s25, 1
    %p96 = scmp.lt.s32.totalorder %s95, 1
    %s97 = scalar_select %p96, %s95, 1
    %s98 = ssub.s32 %s17, %s29
    %s99 = ssub.s32 %s94, %s97
    %s100 = sor.u32 %s98, %s99
    %p101 = scmp.eq.s32.totalorder %s100, 0
    %s103 = sadd.s32 %s102, 1
    %s104 = scalar_select %p101, %s102, %s103
    %p107 = pneg %p101
    %p108 = scmp.eq.s32.totalorder %s10, 3
    %p109 = por %p107, %p108
    %p110 = scmp.ne.s32.totalorder %s102, %s105
    %p111 = scmp.eq.s32.totalorder %s10, 0
    %p112 = por %p110, %p111
    %p113 = scmp.ne.s32.totalorder %s102, %s105
    %p114 = scmp.eq.s32.totalorder %s15, 3
    %p115 = por %p113, %p114
    %p116 = scmp.ne.s32.totalorder %s105, %s106
    %p117 = scmp.eq.s32.totalorder %s15, 0
    %p118 = por %p116, %p117
    %p119 = scmp.ne.s32.totalorder %s105, %s106
    %p120 = scmp.eq.s32.totalorder %s16, 3
    %p121 = por %p119, %p120
    %p123 = scmp.ne.s32.totalorder %s106, %s122
    %p124 = scmp.eq.s32.totalorder %s16, 0
    %p125 = por %p123, %p124
    %s127 = sadd.s32 %s126, 1
    %p130 = scmp.eq.s32.totalorder %s10, 3
    %p131 = scmp.ne.s32.totalorder %s126, %s128
    %p132 = scmp.eq.s32.totalorder %s10, 0
    %p133 = por %p131, %p132
    %p134 = scmp.ne.s32.totalorder %s126, %s128
    %p135 = scmp.eq.s32.totalorder %s15, 3
    %p136 = por %p134, %p135
    %p137 = scmp.ne.s32.totalorder %s128, %s129
    %p138 = scmp.eq.s32.totalorder %s15, 0
    %p139 = por %p137, %p138
    %p140 = scmp.ne.s32.totalorder %s128, %s129
    %p141 = scmp.eq.s32.totalorder %s16, 3
    %p142 = por %p140, %p141
    %p144 = scmp.ne.s32.totalorder %s129, %s143
    %p145 = scmp.eq.s32.totalorder %s16, 0
    %p146 = por %p144, %p145
    %s147 = ssub.s32 %s17, %s29
    %s148 = ssub.s32 %s18, %s25
    %s149 = sor.u32 %s147, %s148
    %p150 = scmp.eq.s32.totalorder %s149, 0
    %s152 = sadd.s32 %s151, 1
    %s153 = scalar_select %p150, %s151, %s152
    %p156 = pneg %p150
    %p157 = scmp.eq.s32.totalorder %s10, 3
    %p158 = por %p156, %p157
    %p159 = scmp.ne.s32.totalorder %s151, %s154
    %p160 = scmp.eq.s32.totalorder %s10, 0
    %p161 = por %p159, %p160
    %p162 = scmp.ne.s32.totalorder %s151, %s154
    %p163 = scmp.eq.s32.totalorder %s15, 3
    %p164 = por %p162, %p163
    %p165 = scmp.ne.s32.totalorder %s154, %s155
    %p166 = scmp.eq.s32.totalorder %s15, 0
    %p167 = por %p165, %p166
    %p168 = scmp.ne.s32.totalorder %s154, %s155
    %p169 = scmp.eq.s32.totalorder %s16, 3
    %p170 = por %p168, %p169
    %p172 = scmp.ne.s32.totalorder %s155, %s171
    %p173 = scmp.eq.s32.totalorder %s16, 0
    %p174 = por %p172, %p173
    %p175 = scmp.le.s32.totalorder 1, %s10
    %p176 = scmp.lt.s32.totalorder %s10, 5
    %p177 = pnand %p175, %p176
    %p178 = pneg %p177
    // Predicated region
    $region9: #{d_block_forward.2} parent=5 // pred_check
      _
    $region10: #{d_block_forward.2} parent=5 // pred_check_branch
      %180 = sbr.rel (%p177) target = $region12
    $region11: #{d_block_forward.2} parent=5 // pred_region
      %s181 = ssub.s32 %s10, 1
      // Predicated region
      $region13: #{d_block_forward.2} parent=11 // pred_check
        %p182 = pneg %p139
      $region14: #{d_block_forward.2} parent=11 // pred_check_branch
        %184 = sbr.rel (%p182) target = $region16
      $region15: #{d_block_forward.2} parent=11 // pred_region
        _
      $region16: #{d_block_forward.2} parent=11 // pred_fallthru
        _
    $region12: #{d_block_forward.2} parent=5 // pred_fallthru
      _
    %p185 = scmp.lt.s32.totalorder %s10, 4
    // Predicated region
    $region17: #{d_block_forward.2} parent=5 // pred_check
      %p186 = pneg %p185
    $region18: #{d_block_forward.2} parent=5 // pred_check_branch
      %188 = sbr.rel (%p186) target = $region20
    $region19: #{d_block_forward.2} parent=5 // pred_region
      // Predicated region
      $region21: #{d_block_forward.2} parent=19 // pred_check
        %p189 = pneg %p44
      $region22: #{d_block_forward.2} parent=19 // pred_check_branch
        %191 = sbr.rel (%p189) target = $region24
      $region23: #{d_block_forward.2} parent=19 // pred_region
        %p192 = scmp.lt.s32.totalorder %s17, 1
        %s193 = scalar_select %p192, %s17, 1
        %p194 = scmp.lt.s32.totalorder %s18, 1
        %s195 = scalar_select %p194, %s18, 1
        %s196 = smul.addr %s193, 2
        %s197 = sadd.s32 %s195, %s196
        %s198 = smul.addr %s197, 8
        %s199 = scalar_lea.vmem %s0, %s198
      $region24: #{d_block_forward.2} parent=19 // pred_fallthru
        _
      // Predicated region
      $region25: #{d_block_forward.2} parent=19 // pred_check
        %p200 = pneg %p78
      $region26: #{d_block_forward.2} parent=19 // pred_check_branch
        %202 = sbr.rel (%p200) target = $region28
      $region27: #{d_block_forward.2} parent=19 // pred_region
        %s203 = ssub.s32 %s18, 1
        %p204 = scmp.gt.s32.totalorder %s203, 0
        %s205 = scalar_select %p204, %s203, 0
        %p206 = scmp.lt.s32.totalorder %s17, 1
        %s207 = scalar_select %p206, %s17, 1
        %p208 = scmp.lt.s32.totalorder %s205, 1
        %s209 = scalar_select %p208, %s205, 1
        %s210 = smul.addr %s207, 2
        %s211 = sadd.s32 %s209, %s210
        %s212 = smul.addr %s211, 8
        %s213 = scalar_lea.vmem %s1, %s212
        %s214 = ssub.s32 %s18, 1
        %p215 = scmp.gt.s32.totalorder %s214, 0
        %s216 = scalar_select %p215, %s214, 0
      $region28: #{d_block_forward.2} parent=19 // pred_fallthru
        _
      // Predicated region
      $region29: #{d_block_forward.2} parent=19 // pred_check
        %p217 = pneg %p112
      $region30: #{d_block_forward.2} parent=19 // pred_check_branch
        %219 = sbr.rel (%p217) target = $region32
      $region31: #{d_block_forward.2} parent=19 // pred_region
        %s220 = sadd.s32 %s18, 1
        %p221 = scmp.lt.s32.totalorder %s220, 1
        %s222 = scalar_select %p221, %s220, 1
        %p223 = scmp.lt.s32.totalorder %s17, 1
        %s224 = scalar_select %p223, %s17, 1
        %p225 = scmp.lt.s32.totalorder %s222, 1
        %s226 = scalar_select %p225, %s222, 1
        %s227 = smul.addr %s224, 2
        %s228 = sadd.s32 %s226, %s227
        %s229 = smul.addr %s228, 8
        %s230 = scalar_lea.vmem %s2, %s229
        %s231 = sadd.s32 %s18, 1
        %p232 = scmp.lt.s32.totalorder %s231, 1
        %s233 = scalar_select %p232, %s231, 1
      $region32: #{d_block_forward.2} parent=19 // pred_fallthru
        _
    $region20: #{d_block_forward.2} parent=5 // pred_fallthru
      _
    %p234 = scmp.le.s32.totalorder 1, %s10
    %p235 = scmp.lt.s32.totalorder %s10, 5
    %p236 = pnand %p234, %p235
    %p237 = pneg %p236
    // Predicated region
    $region33: #{d_block_forward.2} parent=5 // pred_check
      _
    $region34: #{d_block_forward.2} parent=5 // pred_check_branch
      %239 = sbr.rel (%p236) target = $region36
    $region35: #{d_block_forward.2} parent=5 // pred_region
      %s240 = ssub.s32 %s10, 1
      %p241 = scmp.lt.s32.totalorder %s19, 1
      %s242 = scalar_select %p241, %s19, 1
      %p243 = scmp.lt.s32.totalorder %s20, 1
      %s244 = scalar_select %p243, %s20, 1
      %s245 = smul.addr %s242, 2
      %s246 = sadd.s32 %s244, %s245
      %s247 = smul.addr %s246, 8
      %s248 = scalar_lea.vmem %s0, %s247
      %p249 = pneg %p50
      %p250 = pneg %p47
      %s251 = ssub.s32 %s20, 1
      %p252 = scmp.gt.s32.totalorder %s251, 0
      %s253 = scalar_select %p252, %s251, 0
      %p254 = scmp.lt.s32.totalorder %s19, 1
      %s255 = scalar_select %p254, %s19, 1
      %p256 = scmp.lt.s32.totalorder %s253, 1
      %s257 = scalar_select %p256, %s253, 1
      %s258 = smul.addr %s255, 2
      %s259 = sadd.s32 %s257, %s258
      %s260 = smul.addr %s259, 8
      %s261 = scalar_lea.vmem %s1, %s260
      %p262 = pneg %p84
      %p263 = pneg %p81
      %s264 = sadd.s32 %s20, 1
      %p265 = scmp.lt.s32.totalorder %s264, 1
      %s266 = scalar_select %p265, %s264, 1
      %p267 = scmp.lt.s32.totalorder %s19, 1
      %s268 = scalar_select %p267, %s19, 1
      %p269 = scmp.lt.s32.totalorder %s266, 1
      %s270 = scalar_select %p269, %s266, 1
      %s271 = smul.addr %s268, 2
      %s272 = sadd.s32 %s270, %s271
      %s273 = smul.addr %s272, 8
      %s274 = scalar_lea.vmem %s2, %s273
      %p275 = pneg %p118
      %p276 = pneg %p115
      %p277 = pneg %p139
      %p278 = pneg %p136
      %p279 = pneg %p167
      %p280 = pneg %p164
      %p281 = scmp.lt.s32.totalorder %s19, 1
      %s282 = scalar_select %p281, %s19, 1
      %p283 = scmp.lt.s32.totalorder %s20, 1
      %s284 = scalar_select %p283, %s20, 1
      %s285 = smul.addr %s282, 2
      %s286 = sadd.s32 %s284, %s285
      %s287 = smul.addr %s286, 2
      %s288 = scalar_lea.vmem %s4, %s287
      %p289 = scmp.lt.s32.totalorder %s19, 1
      %s290 = scalar_select %p289, %s19, 1
      %p291 = scmp.lt.s32.totalorder %s20, 1
      %s292 = scalar_select %p291, %s20, 1
      %s293 = smul.addr %s290, 2
      %s294 = sadd.s32 %s292, %s293
      %s295 = smul.addr %s294, 8
      %s296 = scalar_lea.vmem %s0, %s295
      %s297 = ssub.s32 %s20, 1
      %p298 = scmp.gt.s32.totalorder %s297, 0
      %s299 = scalar_select %p298, %s297, 0
      %p300 = scmp.lt.s32.totalorder %s19, 1
      %s301 = scalar_select %p300, %s19, 1
      %p302 = scmp.lt.s32.totalorder %s299, 1
      %s303 = scalar_select %p302, %s299, 1
      %s304 = smul.addr %s301, 2
      %s305 = sadd.s32 %s303, %s304
      %s306 = smul.addr %s305, 8
      %s307 = scalar_lea.vmem %s1, %s306
      %s308 = ssub.s32 %s20, 1
      %p309 = scmp.gt.s32.totalorder %s308, 0
      %s310 = scalar_select %p309, %s308, 0
      %s311 = sadd.s32 %s20, 1
      %p312 = scmp.lt.s32.totalorder %s311, 1
      %s313 = scalar_select %p312, %s311, 1
      %p314 = scmp.lt.s32.totalorder %s19, 1
      %s315 = scalar_select %p314, %s19, 1
      %p316 = scmp.lt.s32.totalorder %s313, 1
      %s317 = scalar_select %p316, %s313, 1
      %s318 = smul.addr %s315, 2
      %s319 = sadd.s32 %s317, %s318
      %s320 = smul.addr %s319, 8
      %s321 = scalar_lea.vmem %s2, %s320
      %s322 = sadd.s32 %s20, 1
      %p323 = scmp.lt.s32.totalorder %s322, 1
      %s324 = scalar_select %p323, %s322, 1
      %p325 = scmp.lt.s32.totalorder %s19, 1
      %s326 = scalar_select %p325, %s19, 1
      %p327 = scmp.lt.s32.totalorder %s20, 1
      %s328 = scalar_select %p327, %s20, 1
      %s329 = smul.addr %s326, 2
      %s330 = sadd.s32 %s328, %s329
      %s331 = smul.addr %s330, 2
      %s332 = scalar_lea.vmem %s4, %s331
      %v333 = vld [vmem:[%s296] sm:$0xff]
      %v334 = vld [vmem:[%s307 + $0x7] sm:$0x1]
      %p335 = scmp.gt.s32.totalorder %s20, 0
      %s336 = scalar_select %p335, 1, 0
      %s337 = scvt.s32.f32 %s336
      %v338 = vstv %s337
      %v339 = vmul.f32 %v334, %v338
      %v340 = vld [vmem:[%s321] sm:$0x1]
      %p341 = scmp.lt.s32.totalorder %s20, 1
      %s342 = scalar_select %p341, 1, 0
      %s343 = scvt.s32.f32 %s342
      %v344 = vstv %s343
      %v345 = vmul.f32 %v340, %v344
      %v347 = vrot.slane %v333, 7
      %v350 = vrot.slane %v345, 7
      %vm352 = vcmask 1040384
      %v353 = vsel %vm352, %v339, %v347
      %v354 = vsel %vm352, %v347, %v350
      %v355 = vld [vmem:[%s3] sm:$0xff]
      %v356 = vld [vmem:[%s3 + $0x8] sm:$0xff]
      %v357 = vld [vmem:[%s3 + $0x10] sm:$0xff]
      %v358 = vld [vmem:[%s3 + $0x18] sm:$0xff]
      %v359 = vld [vmem:[%s3 + $0x20] sm:$0xff]
      %v360 = vld [vmem:[%s3 + $0x28] sm:$0xff]
      %v361 = vld [vmem:[%s3 + $0x30] sm:$0xff]
      %v362 = vld [vmem:[%s3 + $0x38] sm:$0xff]
      %s363 = scalar_lea.vmem %s3, 64
      %v364 = vld [vmem:[%s363] sm:$0xff]
      %v365 = vld [vmem:[%s363 + $0x8] sm:$0xff]
      %v366 = vld [vmem:[%s363 + $0x10] sm:$0xff]
      %v367 = vld [vmem:[%s363 + $0x18] sm:$0xff]
      %v368 = vld [vmem:[%s363 + $0x20] sm:$0xff]
      %v369 = vld [vmem:[%s363 + $0x28] sm:$0xff]
      %v370 = vld [vmem:[%s363 + $0x30] sm:$0xff]
      %v371 = vld [vmem:[%s363 + $0x38] sm:$0xff]
      %vm374 = vcmask 1046528
      %v375 = vrot.slane %v353, 1
      %v376 = vrot.slane %v354, 1
      %v377 = vsel %vm374, %v375, %v376
      %vm378 = vcmask 523264
      %v379 = vsel %vm378, %v377, 0
      %381 = vmatprep.subr.mxu0 0.0
      %382 = vmatpush1.msra.mxu0 0.0
      %383 = vmatprep.subr.mxu0 0.0
      %384 = vmatpush1.msra.mxu0 0.0
      %385 = vmatprep.subr.mxu0 0.0
      %386 = vmatpush1.msra.mxu0 0.0
      %387 = vmatprep.subr.mxu0 0.0
      %388 = vmatpush1.msra.mxu0 0.0
      %389 = vmatprep.subr.mxu0 0.0
      %390 = vmatpush1.msra.mxu0 0.0
      %391 = vmatprep.subr.mxu0 0.0
      %392 = vmatpush1.msra.mxu0 0.0
      %393 = vmatprep.subr.mxu0 0.0
      %394 = vmatpush1.msra.mxu0 0.0
      %395 = vmatprep.subr.mxu0 0.0
      %396 = vmatpush1.msra.mxu0 0.0
      %397 = vmatprep.subr.mxu0 0.0
      %398 = vmatpush1.msra.mxu0 %v371
      %399 = vmatprep.subr.mxu0 0.0
      %400 = vmatpush1.msra.mxu0 %v370
      %401 = vmatprep.subr.mxu0 0.0
      %402 = vmatpush1.msra.mxu0 %v369
      %403 = vmatprep.subr.mxu0 0.0
      %404 = vmatpush1.msra.mxu0 %v368
      %405 = vmatprep.subr.mxu0 0.0
      %406 = vmatpush1.msra.mxu0 %v367
      %407 = vmatprep.subr.mxu0 0.0
      %408 = vmatpush1.msra.mxu0 %v366
      %409 = vmatprep.subr.mxu0 0.0
      %410 = vmatpush1.msra.mxu0 %v365
      %411 = vmatprep.subr.mxu0 0.0
      %412 = vmatpush1.msra.mxu0 %v364
      %413 = vmatprep.subr.mxu0 0.0
      %414 = vmatpush2.msra.mxu0 0.0
      %415 = vmatprep.subr.mxu0 0.0
      %416 = vmatpush2.msra.mxu0 0.0
      %417 = vmatprep.subr.mxu0 0.0
      %418 = vmatpush2.msra.mxu0 0.0
      %419 = vmatprep.subr.mxu0 0.0
      %420 = vmatpush2.msra.mxu0 0.0
      %421 = vmatprep.subr.mxu0 0.0
      %422 = vmatpush2.msra.mxu0 0.0
      %423 = vmatprep.subr.mxu0 0.0
      %424 = vmatpush2.msra.mxu0 0.0
      %425 = vmatprep.subr.mxu0 0.0
      %426 = vmatpush2.msra.mxu0 0.0
      %427 = vmatprep.subr.mxu0 0.0
      %428 = vmatpush2.msra.mxu0 0.0
      %429 = vmatprep.subr.mxu0 0.0
      %430 = vmatpush2.msra.mxu0 0.0
      %431 = vmatprep.subr.mxu0 0.0
      %432 = vmatpush2.msra.mxu0 0.0
      %433 = vmatprep.subr.mxu0 0.0
      %434 = vmatpush2.msra.mxu0 0.0
      %435 = vmatprep.subr.mxu0 0.0
      %436 = vmatpush2.msra.mxu0 0.0
      %437 = vmatprep.subr.mxu0 0.0
      %438 = vmatpush2.msra.mxu0 0.0
      %439 = vmatprep.subr.mxu0 0.0
      %440 = vmatpush2.msra.mxu0 0.0
      %441 = vmatprep.subr.mxu0 0.0
      %442 = vmatpush2.msra.mxu0 0.0
      %443 = vmatprep.subr.mxu0 0.0
      %444 = vmatpush2.msra.mxu0 0.0
      %445 = vmatprep.mubr.f32.mxu0 0.0
      %446 = vmatmul.mubr.f32.gmra.mxu0 %v379
      %v447 = vpop.f32.mrf.mxu0
      %v448 = vadd.f32 0.0, %v447
      %v449 = vpop.f32.mrf.mxu0
      %450 = vdwg.mxu0
      %v451 = vsel %vm378, %v353, 0
      %453 = vmatprep.subr.mxu0 0.0
      %454 = vmatpush1.msra.mxu0 0.0
      %455 = vmatprep.subr.mxu0 0.0
      %456 = vmatpush1.msra.mxu0 0.0
      %457 = vmatprep.subr.mxu0 0.0
      %458 = vmatpush1.msra.mxu0 0.0
      %459 = vmatprep.subr.mxu0 0.0
      %460 = vmatpush1.msra.mxu0 0.0
      %461 = vmatprep.subr.mxu0 0.0
      %462 = vmatpush1.msra.mxu0 0.0
      %463 = vmatprep.subr.mxu0 0.0
      %464 = vmatpush1.msra.mxu0 0.0
      %465 = vmatprep.subr.mxu0 0.0
      %466 = vmatpush1.msra.mxu0 0.0
      %467 = vmatprep.subr.mxu0 0.0
      %468 = vmatpush1.msra.mxu0 0.0
      %469 = vmatprep.subr.mxu0 0.0
      %470 = vmatpush1.msra.mxu0 %v362
      %471 = vmatprep.subr.mxu0 0.0
      %472 = vmatpush1.msra.mxu0 %v361
      %473 = vmatprep.subr.mxu0 0.0
      %474 = vmatpush1.msra.mxu0 %v360
      %475 = vmatprep.subr.mxu0 0.0
      %476 = vmatpush1.msra.mxu0 %v359
      %477 = vmatprep.subr.mxu0 0.0
      %478 = vmatpush1.msra.mxu0 %v358
      %479 = vmatprep.subr.mxu0 0.0
      %480 = vmatpush1.msra.mxu0 %v357
      %481 = vmatprep.subr.mxu0 0.0
      %482 = vmatpush1.msra.mxu0 %v356
      %483 = vmatprep.subr.mxu0 0.0
      %484 = vmatpush1.msra.mxu0 %v355
      %485 = vmatprep.subr.mxu0 0.0
      %486 = vmatpush2.msra.mxu0 0.0
      %487 = vmatprep.subr.mxu0 0.0
      %488 = vmatpush2.msra.mxu0 0.0
      %489 = vmatprep.subr.mxu0 0.0
      %490 = vmatpush2.msra.mxu0 0.0
      %491 = vmatprep.subr.mxu0 0.0
      %492 = vmatpush2.msra.mxu0 0.0
      %493 = vmatprep.subr.mxu0 0.0
      %494 = vmatpush2.msra.mxu0 0.0
      %495 = vmatprep.subr.mxu0 0.0
      %496 = vmatpush2.msra.mxu0 0.0
      %497 = vmatprep.subr.mxu0 0.0
      %498 = vmatpush2.msra.mxu0 0.0
      %499 = vmatprep.subr.mxu0 0.0
      %500 = vmatpush2.msra.mxu0 0.0
      %501 = vmatprep.subr.mxu0 0.0
      %502 = vmatpush2.msra.mxu0 0.0
      %503 = vmatprep.subr.mxu0 0.0
      %504 = vmatpush2.msra.mxu0 0.0
      %505 = vmatprep.subr.mxu0 0.0
      %506 = vmatpush2.msra.mxu0 0.0
      %507 = vmatprep.subr.mxu0 0.0
      %508 = vmatpush2.msra.mxu0 0.0
      %509 = vmatprep.subr.mxu0 0.0
      %510 = vmatpush2.msra.mxu0 0.0
      %511 = vmatprep.subr.mxu0 0.0
      %512 = vmatpush2.msra.mxu0 0.0
      %513 = vmatprep.subr.mxu0 0.0
      %514 = vmatpush2.msra.mxu0 0.0
      %515 = vmatprep.subr.mxu0 0.0
      %516 = vmatpush2.msra.mxu0 0.0
      %517 = vmatprep.mubr.f32.mxu0 0.0
      %518 = vmatmul.mubr.f32.gmra.mxu0 %v451
      %v519 = vpop.f32.mrf.mxu0
      %v520 = vadd.f32 %v448, %v519
      %v521 = vpop.f32.mrf.mxu0
      %522 = vdwg.mxu0
      %s523 = scalar_lea.vmem %s3, 128
      %v524 = vld [vmem:[%s523] sm:$0xff]
      %v525 = vld [vmem:[%s523 + $0x8] sm:$0xff]
      %v526 = vld [vmem:[%s523 + $0x10] sm:$0xff]
      %v527 = vld [vmem:[%s523 + $0x18] sm:$0xff]
      %v528 = vld [vmem:[%s523 + $0x20] sm:$0xff]
      %v529 = vld [vmem:[%s523 + $0x28] sm:$0xff]
      %v530 = vld [vmem:[%s523 + $0x30] sm:$0xff]
      %v531 = vld [vmem:[%s523 + $0x38] sm:$0xff]
      %vm532 = vcmask 1045504
      %v533 = vrot.slane %v353, 2
      %v534 = vrot.slane %v354, 2
      %v535 = vsel %vm532, %v533, %v534
      %v536 = vsel %vm378, %v535, 0
      %538 = vmatprep.subr.mxu0 0.0
      %539 = vmatpush1.msra.mxu0 0.0
      %540 = vmatprep.subr.mxu0 0.0
      %541 = vmatpush1.msra.mxu0 0.0
      %542 = vmatprep.subr.mxu0 0.0
      %543 = vmatpush1.msra.mxu0 0.0
      %544 = vmatprep.subr.mxu0 0.0
      %545 = vmatpush1.msra.mxu0 0.0
      %546 = vmatprep.subr.mxu0 0.0
      %547 = vmatpush1.msra.mxu0 0.0
      %548 = vmatprep.subr.mxu0 0.0
      %549 = vmatpush1.msra.mxu0 0.0
      %550 = vmatprep.subr.mxu0 0.0
      %551 = vmatpush1.msra.mxu0 0.0
      %552 = vmatprep.subr.mxu0 0.0
      %553 = vmatpush1.msra.mxu0 0.0
      %554 = vmatprep.subr.mxu0 0.0
      %555 = vmatpush1.msra.mxu0 %v531
      %556 = vmatprep.subr.mxu0 0.0
      %557 = vmatpush1.msra.mxu0 %v530
      %558 = vmatprep.subr.mxu0 0.0
      %559 = vmatpush1.msra.mxu0 %v529
      %560 = vmatprep.subr.mxu0 0.0
      %561 = vmatpush1.msra.mxu0 %v528
      %562 = vmatprep.subr.mxu0 0.0
      %563 = vmatpush1.msra.mxu0 %v527
      %564 = vmatprep.subr.mxu0 0.0
      %565 = vmatpush1.msra.mxu0 %v526
      %566 = vmatprep.subr.mxu0 0.0
      %567 = vmatpush1.msra.mxu0 %v525
      %568 = vmatprep.subr.mxu0 0.0
      %569 = vmatpush1.msra.mxu0 %v524
      %570 = vmatprep.subr.mxu0 0.0
      %571 = vmatpush2.msra.mxu0 0.0
      %572 = vmatprep.subr.mxu0 0.0
      %573 = vmatpush2.msra.mxu0 0.0
      %574 = vmatprep.subr.mxu0 0.0
      %575 = vmatpush2.msra.mxu0 0.0
      %576 = vmatprep.subr.mxu0 0.0
      %577 = vmatpush2.msra.mxu0 0.0
      %578 = vmatprep.subr.mxu0 0.0
      %579 = vmatpush2.msra.mxu0 0.0
      %580 = vmatprep.subr.mxu0 0.0
      %581 = vmatpush2.msra.mxu0 0.0
      %582 = vmatprep.subr.mxu0 0.0
      %583 = vmatpush2.msra.mxu0 0.0
      %584 = vmatprep.subr.mxu0 0.0
      %585 = vmatpush2.msra.mxu0 0.0
      %586 = vmatprep.subr.mxu0 0.0
      %587 = vmatpush2.msra.mxu0 0.0
      %588 = vmatprep.subr.mxu0 0.0
      %589 = vmatpush2.msra.mxu0 0.0
      %590 = vmatprep.subr.mxu0 0.0
      %591 = vmatpush2.msra.mxu0 0.0
      %592 = vmatprep.subr.mxu0 0.0
      %593 = vmatpush2.msra.mxu0 0.0
      %594 = vmatprep.subr.mxu0 0.0
      %595 = vmatpush2.msra.mxu0 0.0
      %596 = vmatprep.subr.mxu0 0.0
      %597 = vmatpush2.msra.mxu0 0.0
      %598 = vmatprep.subr.mxu0 0.0
      %599 = vmatpush2.msra.mxu0 0.0
      %600 = vmatprep.subr.mxu0 0.0
      %601 = vmatpush2.msra.mxu0 0.0
      %602 = vmatprep.mubr.f32.mxu0 0.0
      %603 = vmatmul.mubr.f32.gmra.mxu0 %v536
      %v604 = vpop.f32.mrf.mxu0
      %v605 = vadd.f32 0.0, %v604
      %v606 = vpop.f32.mrf.mxu0
      %607 = vdwg.mxu0
      %v608 = vadd.f32 %v520, %v605
      %v609 = vrot.slane %v608, 4
      %v610 = vadd.f32 %v608, %v609
      %v611 = vrot.slane %v610, 2
      %v612 = vadd.f32 %v610, %v611
      %v613 = vrot.slane %v612, 1
      %v614 = vadd.f32 %v612, %v613
      %v615 = vmul.f32 %v608, %v608
      %v616 = vrot.slane %v615, 4
      %v617 = vadd.f32 %v615, %v616
      %v618 = vrot.slane %v617, 2
      %v619 = vadd.f32 %v617, %v618
      %v620 = vrot.slane %v619, 1
      %v621 = vadd.f32 %v619, %v620
      %v622 = vsel %vm352, %v614, %v621
      %623 = vst [vmem:[%s332] sm:$0x3] %v622
      %p624 = scmp.lt.s32.totalorder %s19, 1
      %s625 = scalar_select %p624, %s19, 1
      %p626 = scmp.lt.s32.totalorder %s20, 1
      %s627 = scalar_select %p626, %s20, 1
      %s628 = smul.addr %s625, 2
      %s629 = sadd.s32 %s627, %s628
      %s630 = smul.addr %s629, 2
      %s631 = scalar_lea.vmem %s4, %s630
      // Predicated region
      $region37: #{d_block_forward.2} parent=35 // pred_check
        %p632 = pneg %p164
      $region38: #{d_block_forward.2} parent=35 // pred_check_branch
        %634 = sbr.rel (%p632) target = $region40
      $region39: #{d_block_forward.2} parent=35 // pred_region
        _
      $region40: #{d_block_forward.2} parent=35 // pred_fallthru
        _
    $region36: #{d_block_forward.2} parent=5 // pred_fallthru
      _
    %p635 = scmp.le.s32.totalorder 2, %s10
    // Predicated region
    $region41: #{d_block_forward.2} parent=5 // pred_check
      %p636 = pneg %p635
    $region42: #{d_block_forward.2} parent=5 // pred_check_branch
      %638 = sbr.rel (%p636) target = $region44
    $region43: #{d_block_forward.2} parent=5 // pred_region
      %s639 = ssub.s32 %s10, 2
      // Predicated region
      $region45: #{d_block_forward.2} parent=43 // pred_check
        %p640 = pneg %p170
      $region46: #{d_block_forward.2} parent=43 // pred_check_branch
        %642 = sbr.rel (%p640) target = $region48
      $region47: #{d_block_forward.2} parent=43 // pred_region
        %p643 = scmp.lt.s32.totalorder %s21, 1
        %s644 = scalar_select %p643, %s21, 1
        %p645 = scmp.lt.s32.totalorder %s22, 1
        %s646 = scalar_select %p645, %s22, 1
        %s647 = smul.addr %s644, 2
        %s648 = sadd.s32 %s646, %s647
        %s649 = smul.addr %s648, 2
        %s650 = scalar_lea.vmem %s4, %s649
      $region48: #{d_block_forward.2} parent=43 // pred_fallthru
        _
    $region44: #{d_block_forward.2} parent=5 // pred_fallthru
      _
  $region6: #{d_block_forward.2} parent=0 // loop_footer
    %s14 = sadd.s32 1, %s10
  $region7: #{d_block_forward.2} parent=0 // loop_footer_branch
    %9 = sbr.rel target = $region3
  $region8: #{d_block_forward.2} parent=0 // loop_exit
    _

// kernel: d_block_forward.3
$region0: #{d_block_forward.3}
  #allocation0 [shape = 'u32[]', space=smem, size = 0x4, offset = 0x4, fixed_abs, tag = 'smem constant byte address 0x4 - core index']
  #allocation1 [shape = 'u32[144,128]{1,0:T(1,128)}', space=vmem, size = 0x12000, scoped, tag = 'internal scratch']
  %s0 = inlined_call_operand.vmem [shape: f32[2,16,64], index: 0, kind: input, shape index: {}, may-alias: {0,1,2}]
  %s1 = inlined_call_operand.vmem [shape: f32[2,16,64], index: 1, kind: input, shape index: {}, may-alias: {0,1,2}]
  %s2 = inlined_call_operand.vmem [shape: f32[2,16,64], index: 2, kind: input, shape index: {}, may-alias: {0,1,2}]
  %s3 = inlined_call_operand.vmem [shape: f32[3,64,128], index: 3, kind: input, shape index: {}]
  %s4 = inlined_call_operand.vmem [shape: f32[1,128], index: 4, kind: input, shape index: {}]
  %s5 = inlined_call_operand.vmem [shape: f32[1,128], index: 5, kind: input, shape index: {}]
  %s6 = inlined_call_operand.vmem [shape: f32[2,16,128], index: 6, kind: output, shape index: {}]
  %s7 = sld [smem:[#allocation0]]
  $region57: #{d_block_forward.3} parent=0
    _
  %s9 = ssub.s32 1, %s7
  %s10 = scalar_select 0, %s9, %s7
  loop: start=0, step=1, limit=6
  $region2: #{d_block_forward.3} parent=0 // loop_pre_header
    _
  $region3: #{d_block_forward.3} parent=0 // loop_header
    %s12 = sphi 0, %s16
    %p13 = scmp.ge.s32.totalorder %s12, 6
    %s19 = sphi 0, %s31
    %s20 = sphi 0, %s27
    %s21 = sphi 0, %s19
    %s22 = sphi 0, %s20
    %s23 = sphi 0, %s21
    %s24 = sphi 0, %s22
    %s36 = sphi 0, %s38
    %s39 = sphi 0, %s36
    %s40 = sphi 0, %s39
    %s56 = sphi 0, %s40
    %s70 = sphi 0, %s72
    %s73 = sphi 0, %s70
    %s74 = sphi 0, %s73
    %s90 = sphi 0, %s74
    %s104 = sphi 0, %s106
    %s107 = sphi 0, %s104
    %s108 = sphi 0, %s107
    %s124 = sphi 0, %s108
    %s128 = sphi 0, %s128
    %s130 = sphi 0, %s128
    %s131 = sphi 0, %s130
    %s145 = sphi 0, %s131
    %s149 = sphi 0, %s149
    %s151 = sphi 0, %s149
    %s152 = sphi 0, %s151
    %s166 = sphi 0, %s152
    %s170 = sphi 0, %s170
    %s172 = sphi 0, %s170
    %s173 = sphi 0, %s172
    %s187 = sphi 0, %s173
    %s195 = sphi 0, %s197
    %s198 = sphi 0, %s195
    %s199 = sphi 0, %s198
    %s215 = sphi 0, %s199
  $region4: #{d_block_forward.3} parent=0 // loop_header_branch
    %15 = sbr.rel (%p13) target = $region8
  $region5: #{d_block_forward.3} parent=0 // loop_body
    %s17 = ssub.s32 %s12, 1
    %s18 = ssub.s32 %s12, 2
    %s25 = sadd.s32 1, %s20
    %p26 = scmp.ge.s32.totalorder %s25, 2
    %s27 = scalar_select %p26, 0, %s25
    %s28 = sadd.s32 1, %s19
    %s29 = scalar_select %p26, %s28, %s19
    %p30 = scmp.ge.s32.totalorder %s29, 2
    %s31 = scalar_select %p30, 0, %s29
    %s32 = ssub.s32 %s19, %s31
    %s33 = ssub.s32 %s20, %s27
    %s34 = sor.u32 %s32, %s33
    %p35 = scmp.eq.s32.totalorder %s34, 0
    %s37 = sadd.s32 %s36, 1
    %s38 = scalar_select %p35, %s36, %s37
    %p41 = pneg %p35
    %p42 = scmp.eq.s32.totalorder %s12, 3
    %p43 = por %p41, %p42
    %p44 = scmp.ne.s32.totalorder %s36, %s39
    %p45 = scmp.eq.s32.totalorder %s12, 0
    %p46 = por %p44, %p45
    %p47 = scmp.ne.s32.totalorder %s36, %s39
    %p48 = scmp.eq.s32.totalorder %s17, 3
    %p49 = por %p47, %p48
    %p50 = scmp.ne.s32.totalorder %s39, %s40
    %p51 = scmp.eq.s32.totalorder %s17, 0
    %p52 = por %p50, %p51
    %p53 = scmp.ne.s32.totalorder %s39, %s40
    %p54 = scmp.eq.s32.totalorder %s18, 3
    %p55 = por %p53, %p54
    %p57 = scmp.ne.s32.totalorder %s40, %s56
    %p58 = scmp.eq.s32.totalorder %s18, 0
    %p59 = por %p57, %p58
    %s60 = ssub.s32 %s20, 1
    %p61 = scmp.gt.s32.totalorder %s60, 0
    %s62 = scalar_select %p61, %s60, 0
    %s63 = ssub.s32 %s27, 1
    %p64 = scmp.gt.s32.totalorder %s63, 0
    %s65 = scalar_select %p64, %s63, 0
    %s66 = ssub.s32 %s19, %s31
    %s67 = ssub.s32 %s62, %s65
    %s68 = sor.u32 %s66, %s67
    %p69 = scmp.eq.s32.totalorder %s68, 0
    %s71 = sadd.s32 %s70, 1
    %s72 = scalar_select %p69, %s70, %s71
    %p75 = pneg %p69
    %p76 = scmp.eq.s32.totalorder %s12, 3
    %p77 = por %p75, %p76
    %p78 = scmp.ne.s32.totalorder %s70, %s73
    %p79 = scmp.eq.s32.totalorder %s12, 0
    %p80 = por %p78, %p79
    %p81 = scmp.ne.s32.totalorder %s70, %s73
    %p82 = scmp.eq.s32.totalorder %s17, 3
    %p83 = por %p81, %p82
    %p84 = scmp.ne.s32.totalorder %s73, %s74
    %p85 = scmp.eq.s32.totalorder %s17, 0
    %p86 = por %p84, %p85
    %p87 = scmp.ne.s32.totalorder %s73, %s74
    %p88 = scmp.eq.s32.totalorder %s18, 3
    %p89 = por %p87, %p88
    %p91 = scmp.ne.s32.totalorder %s74, %s90
    %p92 = scmp.eq.s32.totalorder %s18, 0
    %p93 = por %p91, %p92
    %s94 = sadd.s32 %s20, 1
    %p95 = scmp.lt.s32.totalorder %s94, 1
    %s96 = scalar_select %p95, %s94, 1
    %s97 = sadd.s32 %s27, 1
    %p98 = scmp.lt.s32.totalorder %s97, 1
    %s99 = scalar_select %p98, %s97, 1
    %s100 = ssub.s32 %s19, %s31
    %s101 = ssub.s32 %s96, %s99
    %s102 = sor.u32 %s100, %s101
    %p103 = scmp.eq.s32.totalorder %s102, 0
    %s105 = sadd.s32 %s104, 1
    %s106 = scalar_select %p103, %s104, %s105
    %p109 = pneg %p103
    %p110 = scmp.eq.s32.totalorder %s12, 3
    %p111 = por %p109, %p110
    %p112 = scmp.ne.s32.totalorder %s104, %s107
    %p113 = scmp.eq.s32.totalorder %s12, 0
    %p114 = por %p112, %p113
    %p115 = scmp.ne.s32.totalorder %s104, %s107
    %p116 = scmp.eq.s32.totalorder %s17, 3
    %p117 = por %p115, %p116
    %p118 = scmp.ne.s32.totalorder %s107, %s108
    %p119 = scmp.eq.s32.totalorder %s17, 0
    %p120 = por %p118, %p119
    %p121 = scmp.ne.s32.totalorder %s107, %s108
    %p122 = scmp.eq.s32.totalorder %s18, 3
    %p123 = por %p121, %p122
    %p125 = scmp.ne.s32.totalorder %s108, %s124
    %p126 = scmp.eq.s32.totalorder %s18, 0
    %p127 = por %p125, %p126
    %s129 = sadd.s32 %s128, 1
    %p132 = scmp.eq.s32.totalorder %s12, 3
    %p133 = scmp.ne.s32.totalorder %s128, %s130
    %p134 = scmp.eq.s32.totalorder %s12, 0
    %p135 = por %p133, %p134
    %p136 = scmp.ne.s32.totalorder %s128, %s130
    %p137 = scmp.eq.s32.totalorder %s17, 3
    %p138 = por %p136, %p137
    %p139 = scmp.ne.s32.totalorder %s130, %s131
    %p140 = scmp.eq.s32.totalorder %s17, 0
    %p141 = por %p139, %p140
    %p142 = scmp.ne.s32.totalorder %s130, %s131
    %p143 = scmp.eq.s32.totalorder %s18, 3
    %p144 = por %p142, %p143
    %p146 = scmp.ne.s32.totalorder %s131, %s145
    %p147 = scmp.eq.s32.totalorder %s18, 0
    %p148 = por %p146, %p147
    %s150 = sadd.s32 %s149, 1
    %p153 = scmp.eq.s32.totalorder %s12, 3
    %p154 = scmp.ne.s32.totalorder %s149, %s151
    %p155 = scmp.eq.s32.totalorder %s12, 0
    %p156 = por %p154, %p155
    %p157 = scmp.ne.s32.totalorder %s149, %s151
    %p158 = scmp.eq.s32.totalorder %s17, 3
    %p159 = por %p157, %p158
    %p160 = scmp.ne.s32.totalorder %s151, %s152
    %p161 = scmp.eq.s32.totalorder %s17, 0
    %p162 = por %p160, %p161
    %p163 = scmp.ne.s32.totalorder %s151, %s152
    %p164 = scmp.eq.s32.totalorder %s18, 3
    %p165 = por %p163, %p164
    %p167 = scmp.ne.s32.totalorder %s152, %s166
    %p168 = scmp.eq.s32.totalorder %s18, 0
    %p169 = por %p167, %p168
    %s171 = sadd.s32 %s170, 1
    %p174 = scmp.eq.s32.totalorder %s12, 3
    %p175 = scmp.ne.s32.totalorder %s170, %s172
    %p176 = scmp.eq.s32.totalorder %s12, 0
    %p177 = por %p175, %p176
    %p178 = scmp.ne.s32.totalorder %s170, %s172
    %p179 = scmp.eq.s32.totalorder %s17, 3
    %p180 = por %p178, %p179
    %p181 = scmp.ne.s32.totalorder %s172, %s173
    %p182 = scmp.eq.s32.totalorder %s17, 0
    %p183 = por %p181, %p182
    %p184 = scmp.ne.s32.totalorder %s172, %s173
    %p185 = scmp.eq.s32.totalorder %s18, 3
    %p186 = por %p184, %p185
    %p188 = scmp.ne.s32.totalorder %s173, %s187
    %p189 = scmp.eq.s32.totalorder %s18, 0
    %p190 = por %p188, %p189
    %s191 = ssub.s32 %s19, %s31
    %s192 = ssub.s32 %s20, %s27
    %s193 = sor.u32 %s191, %s192
    %p194 = scmp.eq.s32.totalorder %s193, 0
    %s196 = sadd.s32 %s195, 1
    %s197 = scalar_select %p194, %s195, %s196
    %p200 = pneg %p194
    %p201 = scmp.eq.s32.totalorder %s12, 3
    %p202 = por %p200, %p201
    %p203 = scmp.ne.s32.totalorder %s195, %s198
    %p204 = scmp.eq.s32.totalorder %s12, 0
    %p205 = por %p203, %p204
    %p206 = scmp.ne.s32.totalorder %s195, %s198
    %p207 = scmp.eq.s32.totalorder %s17, 3
    %p208 = por %p206, %p207
    %p209 = scmp.ne.s32.totalorder %s198, %s199
    %p210 = scmp.eq.s32.totalorder %s17, 0
    %p211 = por %p209, %p210
    %p212 = scmp.ne.s32.totalorder %s198, %s199
    %p213 = scmp.eq.s32.totalorder %s18, 3
    %p214 = por %p212, %p213
    %p216 = scmp.ne.s32.totalorder %s199, %s215
    %p217 = scmp.eq.s32.totalorder %s18, 0
    %p218 = por %p216, %p217
    %p219 = scmp.le.s32.totalorder 1, %s12
    %p220 = scmp.lt.s32.totalorder %s12, 5
    %p221 = pnand %p219, %p220
    %p222 = pneg %p221
    // Predicated region
    $region9: #{d_block_forward.3} parent=5 // pred_check
      _
    $region10: #{d_block_forward.3} parent=5 // pred_check_branch
      %224 = sbr.rel (%p221) target = $region12
    $region11: #{d_block_forward.3} parent=5 // pred_region
      %s225 = ssub.s32 %s12, 1
      // Predicated region
      $region13: #{d_block_forward.3} parent=11 // pred_check
        %p226 = pneg %p141
      $region14: #{d_block_forward.3} parent=11 // pred_check_branch
        %228 = sbr.rel (%p226) target = $region16
      $region15: #{d_block_forward.3} parent=11 // pred_region
        _
      $region16: #{d_block_forward.3} parent=11 // pred_fallthru
        _
      // Predicated region
      $region17: #{d_block_forward.3} parent=11 // pred_check
        %p229 = pneg %p162
      $region18: #{d_block_forward.3} parent=11 // pred_check_branch
        %231 = sbr.rel (%p229) target = $region20
      $region19: #{d_block_forward.3} parent=11 // pred_region
        _
      $region20: #{d_block_forward.3} parent=11 // pred_fallthru
        _
      // Predicated region
      $region21: #{d_block_forward.3} parent=11 // pred_check
        %p232 = pneg %p183
      $region22: #{d_block_forward.3} parent=11 // pred_check_branch
        %234 = sbr.rel (%p232) target = $region24
      $region23: #{d_block_forward.3} parent=11 // pred_region
        _
      $region24: #{d_block_forward.3} parent=11 // pred_fallthru
        _
    $region12: #{d_block_forward.3} parent=5 // pred_fallthru
      _
    %p235 = scmp.lt.s32.totalorder %s12, 4
    // Predicated region
    $region25: #{d_block_forward.3} parent=5 // pred_check
      %p236 = pneg %p235
    $region26: #{d_block_forward.3} parent=5 // pred_check_branch
      %238 = sbr.rel (%p236) target = $region28
    $region27: #{d_block_forward.3} parent=5 // pred_region
      // Predicated region
      $region29: #{d_block_forward.3} parent=27 // pred_check
        %p239 = pneg %p46
      $region30: #{d_block_forward.3} parent=27 // pred_check_branch
        %241 = sbr.rel (%p239) target = $region32
      $region31: #{d_block_forward.3} parent=27 // pred_region
        %p242 = scmp.lt.s32.totalorder %s19, 1
        %s243 = scalar_select %p242, %s19, 1
        %p244 = scmp.lt.s32.totalorder %s20, 1
        %s245 = scalar_select %p244, %s20, 1
        %s246 = smul.addr %s243, 2
        %s247 = sadd.s32 %s245, %s246
        %s248 = smul.addr %s247, 8
        %s249 = scalar_lea.vmem %s0, %s248
      $region32: #{d_block_forward.3} parent=27 // pred_fallthru
        _
      // Predicated region
      $region33: #{d_block_forward.3} parent=27 // pred_check
        %p250 = pneg %p80
      $region34: #{d_block_forward.3} parent=27 // pred_check_branch
        %252 = sbr.rel (%p250) target = $region36
      $region35: #{d_block_forward.3} parent=27 // pred_region
        %s253 = ssub.s32 %s20, 1
        %p254 = scmp.gt.s32.totalorder %s253, 0
        %s255 = scalar_select %p254, %s253, 0
        %p256 = scmp.lt.s32.totalorder %s19, 1
        %s257 = scalar_select %p256, %s19, 1
        %p258 = scmp.lt.s32.totalorder %s255, 1
        %s259 = scalar_select %p258, %s255, 1
        %s260 = smul.addr %s257, 2
        %s261 = sadd.s32 %s259, %s260
        %s262 = smul.addr %s261, 8
        %s263 = scalar_lea.vmem %s1, %s262
        %s264 = ssub.s32 %s20, 1
        %p265 = scmp.gt.s32.totalorder %s264, 0
        %s266 = scalar_select %p265, %s264, 0
      $region36: #{d_block_forward.3} parent=27 // pred_fallthru
        _
      // Predicated region
      $region37: #{d_block_forward.3} parent=27 // pred_check
        %p267 = pneg %p114
      $region38: #{d_block_forward.3} parent=27 // pred_check_branch
        %269 = sbr.rel (%p267) target = $region40
      $region39: #{d_block_forward.3} parent=27 // pred_region
        %s270 = sadd.s32 %s20, 1
        %p271 = scmp.lt.s32.totalorder %s270, 1
        %s272 = scalar_select %p271, %s270, 1
        %p273 = scmp.lt.s32.totalorder %s19, 1
        %s274 = scalar_select %p273, %s19, 1
        %p275 = scmp.lt.s32.totalorder %s272, 1
        %s276 = scalar_select %p275, %s272, 1
        %s277 = smul.addr %s274, 2
        %s278 = sadd.s32 %s276, %s277
        %s279 = smul.addr %s278, 8
        %s280 = scalar_lea.vmem %s2, %s279
        %s281 = sadd.s32 %s20, 1
        %p282 = scmp.lt.s32.totalorder %s281, 1
        %s283 = scalar_select %p282, %s281, 1
      $region40: #{d_block_forward.3} parent=27 // pred_fallthru
        _
    $region28: #{d_block_forward.3} parent=5 // pred_fallthru
      _
    %p284 = scmp.le.s32.totalorder 1, %s12
    %p285 = scmp.lt.s32.totalorder %s12, 5
    %p286 = pnand %p284, %p285
    %p287 = pneg %p286
    // Predicated region
    $region41: #{d_block_forward.3} parent=5 // pred_check
      _
    $region42: #{d_block_forward.3} parent=5 // pred_check_branch
      %289 = sbr.rel (%p286) target = $region44
    $region43: #{d_block_forward.3} parent=5 // pred_region
      %s290 = ssub.s32 %s12, 1
      %p291 = scmp.lt.s32.totalorder %s21, 1
      %s292 = scalar_select %p291, %s21, 1
      %p293 = scmp.lt.s32.totalorder %s22, 1
      %s294 = scalar_select %p293, %s22, 1
      %s295 = smul.addr %s292, 2
      %s296 = sadd.s32 %s294, %s295
      %s297 = smul.addr %s296, 8
      %s298 = scalar_lea.vmem %s0, %s297
      %p299 = pneg %p52
      %p300 = pneg %p49
      %s301 = ssub.s32 %s22, 1
      %p302 = scmp.gt.s32.totalorder %s301, 0
      %s303 = scalar_select %p302, %s301, 0
      %p304 = scmp.lt.s32.totalorder %s21, 1
      %s305 = scalar_select %p304, %s21, 1
      %p306 = scmp.lt.s32.totalorder %s303, 1
      %s307 = scalar_select %p306, %s303, 1
      %s308 = smul.addr %s305, 2
      %s309 = sadd.s32 %s307, %s308
      %s310 = smul.addr %s309, 8
      %s311 = scalar_lea.vmem %s1, %s310
      %p312 = pneg %p86
      %p313 = pneg %p83
      %s314 = sadd.s32 %s22, 1
      %p315 = scmp.lt.s32.totalorder %s314, 1
      %s316 = scalar_select %p315, %s314, 1
      %p317 = scmp.lt.s32.totalorder %s21, 1
      %s318 = scalar_select %p317, %s21, 1
      %p319 = scmp.lt.s32.totalorder %s316, 1
      %s320 = scalar_select %p319, %s316, 1
      %s321 = smul.addr %s318, 2
      %s322 = sadd.s32 %s320, %s321
      %s323 = smul.addr %s322, 8
      %s324 = scalar_lea.vmem %s2, %s323
      %p325 = pneg %p120
      %p326 = pneg %p117
      %p327 = pneg %p141
      %p328 = pneg %p138
      %p329 = pneg %p162
      %p330 = pneg %p159
      %p331 = pneg %p183
      %p332 = pneg %p180
      %p333 = pneg %p211
      %p334 = pneg %p208
      %p335 = scmp.lt.s32.totalorder %s21, 1
      %s336 = scalar_select %p335, %s21, 1
      %p337 = scmp.lt.s32.totalorder %s22, 1
      %s338 = scalar_select %p337, %s22, 1
      %s339 = smul.addr %s336, 2
      %s340 = sadd.s32 %s338, %s339
      %s341 = smul.addr %s340, 8
      %s342 = scalar_lea.vmem %s6, %s341
      %p343 = scmp.lt.s32.totalorder %s21, 1
      %s344 = scalar_select %p343, %s21, 1
      %p345 = scmp.lt.s32.totalorder %s22, 1
      %s346 = scalar_select %p345, %s22, 1
      %s347 = smul.addr %s344, 2
      %s348 = sadd.s32 %s346, %s347
      %s349 = smul.addr %s348, 8
      %s350 = scalar_lea.vmem %s0, %s349
      %s351 = ssub.s32 %s22, 1
      %p352 = scmp.gt.s32.totalorder %s351, 0
      %s353 = scalar_select %p352, %s351, 0
      %p354 = scmp.lt.s32.totalorder %s21, 1
      %s355 = scalar_select %p354, %s21, 1
      %p356 = scmp.lt.s32.totalorder %s353, 1
      %s357 = scalar_select %p356, %s353, 1
      %s358 = smul.addr %s355, 2
      %s359 = sadd.s32 %s357, %s358
      %s360 = smul.addr %s359, 8
      %s361 = scalar_lea.vmem %s1, %s360
      %s362 = ssub.s32 %s22, 1
      %p363 = scmp.gt.s32.totalorder %s362, 0
      %s364 = scalar_select %p363, %s362, 0
      %s365 = sadd.s32 %s22, 1
      %p366 = scmp.lt.s32.totalorder %s365, 1
      %s367 = scalar_select %p366, %s365, 1
      %p368 = scmp.lt.s32.totalorder %s21, 1
      %s369 = scalar_select %p368, %s21, 1
      %p370 = scmp.lt.s32.totalorder %s367, 1
      %s371 = scalar_select %p370, %s367, 1
      %s372 = smul.addr %s369, 2
      %s373 = sadd.s32 %s371, %s372
      %s374 = smul.addr %s373, 8
      %s375 = scalar_lea.vmem %s2, %s374
      %s376 = sadd.s32 %s22, 1
      %p377 = scmp.lt.s32.totalorder %s376, 1
      %s378 = scalar_select %p377, %s376, 1
      %p379 = scmp.lt.s32.totalorder %s21, 1
      %s380 = scalar_select %p379, %s21, 1
      %p381 = scmp.lt.s32.totalorder %s22, 1
      %s382 = scalar_select %p381, %s22, 1
      %s383 = smul.addr %s380, 2
      %s384 = sadd.s32 %s382, %s383
      %s385 = smul.addr %s384, 8
      %s386 = scalar_lea.vmem %s6, %s385
      %v387 = vld [vmem:[%s350] sm:$0xff]
      %v388 = vld [vmem:[%s361 + $0x7] sm:$0x1]
      %p389 = scmp.gt.s32.totalorder %s22, 0
      %s390 = scalar_select %p389, 1, 0
      %s391 = scvt.s32.f32 %s390
      %v392 = vstv %s391
      %v393 = vmul.f32 %v388, %v392
      %v394 = vld [vmem:[%s375] sm:$0x1]
      %p395 = scmp.lt.s32.totalorder %s22, 1
      %s396 = scalar_select %p395, 1, 0
      %s397 = scvt.s32.f32 %s396
      %v398 = vstv %s397
      %v399 = vmul.f32 %v394, %v398
      %v401 = vrot.slane %v387, 7
      %v404 = vrot.slane %v399, 7
      %vm406 = vcmask 1040384
      %v407 = vsel %vm406, %v393, %v401
      %v408 = vsel %vm406, %v401, %v404
      %v409 = vld [vmem:[%s3] sm:$0xff]
      %v410 = vld [vmem:[%s3 + $0x8] sm:$0xff]
      %v411 = vld [vmem:[%s3 + $0x10] sm:$0xff]
      %v412 = vld [vmem:[%s3 + $0x18] sm:$0xff]
      %v413 = vld [vmem:[%s3 + $0x20] sm:$0xff]
      %v414 = vld [vmem:[%s3 + $0x28] sm:$0xff]
      %v415 = vld [vmem:[%s3 + $0x30] sm:$0xff]
      %v416 = vld [vmem:[%s3 + $0x38] sm:$0xff]
      %s417 = scalar_lea.vmem %s3, 64
      %v418 = vld [vmem:[%s417] sm:$0xff]
      %v419 = vld [vmem:[%s417 + $0x8] sm:$0xff]
      %v420 = vld [vmem:[%s417 + $0x10] sm:$0xff]
      %v421 = vld [vmem:[%s417 + $0x18] sm:$0xff]
      %v422 = vld [vmem:[%s417 + $0x20] sm:$0xff]
      %v423 = vld [vmem:[%s417 + $0x28] sm:$0xff]
      %v424 = vld [vmem:[%s417 + $0x30] sm:$0xff]
      %v425 = vld [vmem:[%s417 + $0x38] sm:$0xff]
      %vm428 = vcmask 1046528
      %v429 = vrot.slane %v407, 1
      %v430 = vrot.slane %v408, 1
      %v431 = vsel %vm428, %v429, %v430
      %vm432 = vcmask 523264
      %v433 = vsel %vm432, %v431, 0
      %435 = vmatprep.subr.mxu0 0.0
      %436 = vmatpush1.msra.mxu0 0.0
      %437 = vmatprep.subr.mxu0 0.0
      %438 = vmatpush1.msra.mxu0 0.0
      %439 = vmatprep.subr.mxu0 0.0
      %440 = vmatpush1.msra.mxu0 0.0
      %441 = vmatprep.subr.mxu0 0.0
      %442 = vmatpush1.msra.mxu0 0.0
      %443 = vmatprep.subr.mxu0 0.0
      %444 = vmatpush1.msra.mxu0 0.0
      %445 = vmatprep.subr.mxu0 0.0
      %446 = vmatpush1.msra.mxu0 0.0
      %447 = vmatprep.subr.mxu0 0.0
      %448 = vmatpush1.msra.mxu0 0.0
      %449 = vmatprep.subr.mxu0 0.0
      %450 = vmatpush1.msra.mxu0 0.0
      %451 = vmatprep.subr.mxu0 0.0
      %452 = vmatpush1.msra.mxu0 %v425
      %453 = vmatprep.subr.mxu0 0.0
      %454 = vmatpush1.msra.mxu0 %v424
      %455 = vmatprep.subr.mxu0 0.0
      %456 = vmatpush1.msra.mxu0 %v423
      %457 = vmatprep.subr.mxu0 0.0
      %458 = vmatpush1.msra.mxu0 %v422
      %459 = vmatprep.subr.mxu0 0.0
      %460 = vmatpush1.msra.mxu0 %v421
      %461 = vmatprep.subr.mxu0 0.0
      %462 = vmatpush1.msra.mxu0 %v420
      %463 = vmatprep.subr.mxu0 0.0
      %464 = vmatpush1.msra.mxu0 %v419
      %465 = vmatprep.subr.mxu0 0.0
      %466 = vmatpush1.msra.mxu0 %v418
      %467 = vmatprep.subr.mxu0 0.0
      %468 = vmatpush2.msra.mxu0 0.0
      %469 = vmatprep.subr.mxu0 0.0
      %470 = vmatpush2.msra.mxu0 0.0
      %471 = vmatprep.subr.mxu0 0.0
      %472 = vmatpush2.msra.mxu0 0.0
      %473 = vmatprep.subr.mxu0 0.0
      %474 = vmatpush2.msra.mxu0 0.0
      %475 = vmatprep.subr.mxu0 0.0
      %476 = vmatpush2.msra.mxu0 0.0
      %477 = vmatprep.subr.mxu0 0.0
      %478 = vmatpush2.msra.mxu0 0.0
      %479 = vmatprep.subr.mxu0 0.0
      %480 = vmatpush2.msra.mxu0 0.0
      %481 = vmatprep.subr.mxu0 0.0
      %482 = vmatpush2.msra.mxu0 0.0
      %483 = vmatprep.subr.mxu0 0.0
      %484 = vmatpush2.msra.mxu0 0.0
      %485 = vmatprep.subr.mxu0 0.0
      %486 = vmatpush2.msra.mxu0 0.0
      %487 = vmatprep.subr.mxu0 0.0
      %488 = vmatpush2.msra.mxu0 0.0
      %489 = vmatprep.subr.mxu0 0.0
      %490 = vmatpush2.msra.mxu0 0.0
      %491 = vmatprep.subr.mxu0 0.0
      %492 = vmatpush2.msra.mxu0 0.0
      %493 = vmatprep.subr.mxu0 0.0
      %494 = vmatpush2.msra.mxu0 0.0
      %495 = vmatprep.subr.mxu0 0.0
      %496 = vmatpush2.msra.mxu0 0.0
      %497 = vmatprep.subr.mxu0 0.0
      %498 = vmatpush2.msra.mxu0 0.0
      %499 = vmatprep.mubr.f32.mxu0 0.0
      %500 = vmatmul.mubr.f32.gmra.mxu0 %v433
      %v501 = vpop.f32.mrf.mxu0
      %v502 = vadd.f32 0.0, %v501
      %v503 = vpop.f32.mrf.mxu0
      %504 = vdwg.mxu0
      %v505 = vsel %vm432, %v407, 0
      %507 = vmatprep.subr.mxu0 0.0
      %508 = vmatpush1.msra.mxu0 0.0
      %509 = vmatprep.subr.mxu0 0.0
      %510 = vmatpush1.msra.mxu0 0.0
      %511 = vmatprep.subr.mxu0 0.0
      %512 = vmatpush1.msra.mxu0 0.0
      %513 = vmatprep.subr.mxu0 0.0
      %514 = vmatpush1.msra.mxu0 0.0
      %515 = vmatprep.subr.mxu0 0.0
      %516 = vmatpush1.msra.mxu0 0.0
      %517 = vmatprep.subr.mxu0 0.0
      %518 = vmatpush1.msra.mxu0 0.0
      %519 = vmatprep.subr.mxu0 0.0
      %520 = vmatpush1.msra.mxu0 0.0
      %521 = vmatprep.subr.mxu0 0.0
      %522 = vmatpush1.msra.mxu0 0.0
      %523 = vmatprep.subr.mxu0 0.0
      %524 = vmatpush1.msra.mxu0 %v416
      %525 = vmatprep.subr.mxu0 0.0
      %526 = vmatpush1.msra.mxu0 %v415
      %527 = vmatprep.subr.mxu0 0.0
      %528 = vmatpush1.msra.mxu0 %v414
      %529 = vmatprep.subr.mxu0 0.0
      %530 = vmatpush1.msra.mxu0 %v413
      %531 = vmatprep.subr.mxu0 0.0
      %532 = vmatpush1.msra.mxu0 %v412
      %533 = vmatprep.subr.mxu0 0.0
      %534 = vmatpush1.msra.mxu0 %v411
      %535 = vmatprep.subr.mxu0 0.0
      %536 = vmatpush1.msra.mxu0 %v410
      %537 = vmatprep.subr.mxu0 0.0
      %538 = vmatpush1.msra.mxu0 %v409
      %539 = vmatprep.subr.mxu0 0.0
      %540 = vmatpush2.msra.mxu0 0.0
      %541 = vmatprep.subr.mxu0 0.0
      %542 = vmatpush2.msra.mxu0 0.0
      %543 = vmatprep.subr.mxu0 0.0
      %544 = vmatpush2.msra.mxu0 0.0
      %545 = vmatprep.subr.mxu0 0.0
      %546 = vmatpush2.msra.mxu0 0.0
      %547 = vmatprep.subr.mxu0 0.0
      %548 = vmatpush2.msra.mxu0 0.0
      %549 = vmatprep.subr.mxu0 0.0
      %550 = vmatpush2.msra.mxu0 0.0
      %551 = vmatprep.subr.mxu0 0.0
      %552 = vmatpush2.msra.mxu0 0.0
      %553 = vmatprep.subr.mxu0 0.0
      %554 = vmatpush2.msra.mxu0 0.0
      %555 = vmatprep.subr.mxu0 0.0
      %556 = vmatpush2.msra.mxu0 0.0
      %557 = vmatprep.subr.mxu0 0.0
      %558 = vmatpush2.msra.mxu0 0.0
      %559 = vmatprep.subr.mxu0 0.0
      %560 = vmatpush2.msra.mxu0 0.0
      %561 = vmatprep.subr.mxu0 0.0
      %562 = vmatpush2.msra.mxu0 0.0
      %563 = vmatprep.subr.mxu0 0.0
      %564 = vmatpush2.msra.mxu0 0.0
      %565 = vmatprep.subr.mxu0 0.0
      %566 = vmatpush2.msra.mxu0 0.0
      %567 = vmatprep.subr.mxu0 0.0
      %568 = vmatpush2.msra.mxu0 0.0
      %569 = vmatprep.subr.mxu0 0.0
      %570 = vmatpush2.msra.mxu0 0.0
      %571 = vmatprep.mubr.f32.mxu0 0.0
      %572 = vmatmul.mubr.f32.gmra.mxu0 %v505
      %v573 = vpop.f32.mrf.mxu0
      %v574 = vadd.f32 %v502, %v573
      %v575 = vpop.f32.mrf.mxu0
      %576 = vdwg.mxu0
      %s577 = scalar_lea.vmem %s3, 128
      %v578 = vld [vmem:[%s577] sm:$0xff]
      %v579 = vld [vmem:[%s577 + $0x8] sm:$0xff]
      %v580 = vld [vmem:[%s577 + $0x10] sm:$0xff]
      %v581 = vld [vmem:[%s577 + $0x18] sm:$0xff]
      %v582 = vld [vmem:[%s577 + $0x20] sm:$0xff]
      %v583 = vld [vmem:[%s577 + $0x28] sm:$0xff]
      %v584 = vld [vmem:[%s577 + $0x30] sm:$0xff]
      %v585 = vld [vmem:[%s577 + $0x38] sm:$0xff]
      %vm586 = vcmask 1045504
      %v587 = vrot.slane %v407, 2
      %v588 = vrot.slane %v408, 2
      %v589 = vsel %vm586, %v587, %v588
      %v590 = vsel %vm432, %v589, 0
      %592 = vmatprep.subr.mxu0 0.0
      %593 = vmatpush1.msra.mxu0 0.0
      %594 = vmatprep.subr.mxu0 0.0
      %595 = vmatpush1.msra.mxu0 0.0
      %596 = vmatprep.subr.mxu0 0.0
      %597 = vmatpush1.msra.mxu0 0.0
      %598 = vmatprep.subr.mxu0 0.0
      %599 = vmatpush1.msra.mxu0 0.0
      %600 = vmatprep.subr.mxu0 0.0
      %601 = vmatpush1.msra.mxu0 0.0
      %602 = vmatprep.subr.mxu0 0.0
      %603 = vmatpush1.msra.mxu0 0.0
      %604 = vmatprep.subr.mxu0 0.0
      %605 = vmatpush1.msra.mxu0 0.0
      %606 = vmatprep.subr.mxu0 0.0
      %607 = vmatpush1.msra.mxu0 0.0
      %608 = vmatprep.subr.mxu0 0.0
      %609 = vmatpush1.msra.mxu0 %v585
      %610 = vmatprep.subr.mxu0 0.0
      %611 = vmatpush1.msra.mxu0 %v584
      %612 = vmatprep.subr.mxu0 0.0
      %613 = vmatpush1.msra.mxu0 %v583
      %614 = vmatprep.subr.mxu0 0.0
      %615 = vmatpush1.msra.mxu0 %v582
      %616 = vmatprep.subr.mxu0 0.0
      %617 = vmatpush1.msra.mxu0 %v581
      %618 = vmatprep.subr.mxu0 0.0
      %619 = vmatpush1.msra.mxu0 %v580
      %620 = vmatprep.subr.mxu0 0.0
      %621 = vmatpush1.msra.mxu0 %v579
      %622 = vmatprep.subr.mxu0 0.0
      %623 = vmatpush1.msra.mxu0 %v578
      %624 = vmatprep.subr.mxu0 0.0
      %625 = vmatpush2.msra.mxu0 0.0
      %626 = vmatprep.subr.mxu0 0.0
      %627 = vmatpush2.msra.mxu0 0.0
      %628 = vmatprep.subr.mxu0 0.0
      %629 = vmatpush2.msra.mxu0 0.0
      %630 = vmatprep.subr.mxu0 0.0
      %631 = vmatpush2.msra.mxu0 0.0
      %632 = vmatprep.subr.mxu0 0.0
      %633 = vmatpush2.msra.mxu0 0.0
      %634 = vmatprep.subr.mxu0 0.0
      %635 = vmatpush2.msra.mxu0 0.0
      %636 = vmatprep.subr.mxu0 0.0
      %637 = vmatpush2.msra.mxu0 0.0
      %638 = vmatprep.subr.mxu0 0.0
      %639 = vmatpush2.msra.mxu0 0.0
      %640 = vmatprep.subr.mxu0 0.0
      %641 = vmatpush2.msra.mxu0 0.0
      %642 = vmatprep.subr.mxu0 0.0
      %643 = vmatpush2.msra.mxu0 0.0
      %644 = vmatprep.subr.mxu0 0.0
      %645 = vmatpush2.msra.mxu0 0.0
      %646 = vmatprep.subr.mxu0 0.0
      %647 = vmatpush2.msra.mxu0 0.0
      %648 = vmatprep.subr.mxu0 0.0
      %649 = vmatpush2.msra.mxu0 0.0
      %650 = vmatprep.subr.mxu0 0.0
      %651 = vmatpush2.msra.mxu0 0.0
      %652 = vmatprep.subr.mxu0 0.0
      %653 = vmatpush2.msra.mxu0 0.0
      %654 = vmatprep.subr.mxu0 0.0
      %655 = vmatpush2.msra.mxu0 0.0
      %656 = vmatprep.mubr.f32.mxu0 0.0
      %657 = vmatmul.mubr.f32.gmra.mxu0 %v590
      %v658 = vpop.f32.mrf.mxu0
      %v659 = vadd.f32 0.0, %v658
      %v660 = vpop.f32.mrf.mxu0
      %661 = vdwg.mxu0
      %v662 = vadd.f32 %v574, %v659
      %v663 = vld [vmem:[%s4] sm:$0x1]
      %v665 = vlaneseq
      %v666 = vshrl.u32 %v665, 7
      %v667 = vsub.s32 0, %v666
      %v668 = vrot.slane %v663, %v667
      %v670 = vmul.f32 %v662, %v668
      %v671 = vld [vmem:[%s5] sm:$0x1]
      %v673 = vlaneseq
      %v674 = vshrl.u32 %v673, 7
      %v675 = vsub.s32 0, %v674
      %v676 = vrot.slane %v671, %v675
      %v678 = vadd.f32 %v670, %v676
      %vm679 = vcmp.gt.f32.partialorder %v678, 0.0
      %v680 = vmul.f32 %v678, 0.2
      %v681 = vsel %vm679, %v678, %v680
      %682 = vst [vmem:[%s386] sm:$0xff] %v681
      %p683 = scmp.lt.s32.totalorder %s21, 1
      %s684 = scalar_select %p683, %s21, 1
      %p685 = scmp.lt.s32.totalorder %s22, 1
      %s686 = scalar_select %p685, %s22, 1
      %s687 = smul.addr %s684, 2
      %s688 = sadd.s32 %s686, %s687
      %s689 = smul.addr %s688, 8
      %s690 = scalar_lea.vmem %s6, %s689
      // Predicated region
      $region45: #{d_block_forward.3} parent=43 // pred_check
        %p691 = pneg %p208
      $region46: #{d_block_forward.3} parent=43 // pred_check_branch
        %693 = sbr.rel (%p691) target = $region48
      $region47: #{d_block_forward.3} parent=43 // pred_region
        _
      $region48: #{d_block_forward.3} parent=43 // pred_fallthru
        _
    $region44: #{d_block_forward.3} parent=5 // pred_fallthru
      _
    %p694 = scmp.le.s32.totalorder 2, %s12
    // Predicated region
    $region49: #{d_block_forward.3} parent=5 // pred_check
      %p695 = pneg %p694
    $region50: #{d_block_forward.3} parent=5 // pred_check_branch
      %697 = sbr.rel (%p695) target = $region52
    $region51: #{d_block_forward.3} parent=5 // pred_region
      %s698 = ssub.s32 %s12, 2
      // Predicated region
      $region53: #{d_block_forward.3} parent=51 // pred_check
        %p699 = pneg %p214
      $region54: #{d_block_forward.3} parent=51 // pred_check_branch
        %701 = sbr.rel (%p699) target = $region56
      $region55: #{d_block_forward.3} parent=51 // pred_region
        %p702 = scmp.lt.s32.totalorder %s23, 1
        %s703 = scalar_select %p702, %s23, 1
        %p704 = scmp.lt.s32.totalorder %s24, 1
        %s705 = scalar_select %p704, %s24, 1
        %s706 = smul.addr %s703, 2
        %s707 = sadd.s32 %s705, %s706
        %s708 = smul.addr %s707, 8
        %s709 = scalar_lea.vmem %s6, %s708
      $region56: #{d_block_forward.3} parent=51 // pred_fallthru
        _
    $region52: #{d_block_forward.3} parent=5 // pred_fallthru
      _
  $region6: #{d_block_forward.3} parent=0 // loop_footer
    %s16 = sadd.s32 1, %s12
  $region7: #{d_block_forward.3} parent=0 // loop_footer_branch
    %11 = sbr.rel target = $region3
  $region8: #{d_block_forward.3} parent=0 // loop_exit
    _

</llo_original>
